<compile_context>
chip_gen: v7x
topology: tpu7x:2x2x1
jax: 0.10.0
libtpu: 0.0.40
codegen_flags: <defaults>
</compile_context>

<pallas_src>
import math
import numpy as np
import jax
import jax.numpy as jnp
from jax.experimental import pallas as pl
from jax.experimental.pallas import tpu as pltpu

EPS = 1e-5  # PyTorch BatchNorm1d default


def _round_up(x, m):
    return ((x + m - 1) // m) * m


def up_kernel(x2_ref, x1_ref, ml_ref, mr_ref,
              w1a_ref, w1b_ref, b1_ref, w2_ref, b2_ref, out_ref):
    """One grid step = batch_block batch elements stacked along lanes; tiles are (C, W).

    k=3 'same' conv == three accumulating MXU dots over lane-rolled views; the ml/mr
    masks zero cross-batch (and roll-wraparound) leakage. Elementwise math stays f32
    (v5e has no bf16 VPU); HBM I/O may be bf16.
    """
    W = out_ref.shape[1]
    ml = ml_ref[...]                       # (1, W): 0 at each per-batch LEFT boundary
    mr = mr_ref[...]                       # (1, W): 0 at each per-batch RIGHT boundary

    def conv3(v, w_ref, acc=None):
        # taps: left = x[l-1], center = x[l], right = x[l+1] (per-batch zero pad via masks)
        left = ml * pltpu.roll(v, 1, axis=1)          # XLU rotate; wrap column masked off
        right = mr * pltpu.roll(v, W - 1, axis=1)     # == roll by -1
        y = jnp.dot(w_ref[0], left, preferred_element_type=jnp.float32)
        y = y + jnp.dot(w_ref[1], v, preferred_element_type=jnp.float32)
        y = y + jnp.dot(w_ref[2], right, preferred_element_type=jnp.float32)
        return y if acc is None else acc + y

    x2 = x2_ref[...].astype(jnp.float32)              # (C2, W) skip connection
    x1 = x1_ref[...].astype(jnp.float32)              # (C1, W) upsampled + padded x1

    # conv1 over the (virtual) channel concat [x2; x1]; BN1 scale folded into weights.
    h = conv3(x2, w1a_ref)
    h = conv3(x1, w1b_ref, acc=h)
    h = jnp.maximum(h + b1_ref[...], 0.0)             # BN1 shift + ReLU

    # conv2 (BN2 scale folded) + shift + ReLU.
    y = conv3(h, w2_ref)
    y = jnp.maximum(y + b2_ref[...], 0.0)
    out_ref[...] = y.astype(out_ref.dtype)


def _pick_tiling(N, L2, per_lane_bytes, vmem_budget_bytes, target_lanes):
    """Pick (batch_block, L2p): N % batch_block == 0, (batch_block*L2p) % 128 == 0."""
    max_lanes = max(128, (vmem_budget_bytes // max(per_lane_bytes, 1)) // 128 * 128)
    best_key, best = None, None
    for d in range(1, N + 1):
        if N % d:
            continue
        q = 128 // math.gcd(128, d)
        L2p = _round_up(L2, q)
        lanes = d * L2p
        key = (lanes > max_lanes,          # stay inside the VMEM budget
               (N // d) < 2,               # keep >=2 grid steps (v7x: 2 TensorCores)
               lanes - d * L2,             # minimize lane-padding waste
               abs(lanes - target_lanes))  # tile-size sweet spot (~512+ lanes)
        if best_key is None or key < best_key:
            best_key, best = key, (d, L2p)
    return best


def up_forward(x1, x2, w1, w2, s1, b1, s2, b2, *,
               act_dtype=None, target_lanes=512, vmem_budget_bytes=32 * 2**20):
    """x1: (N, C1, L1) from below; x2: (N, C2, L2) skip; w1: (C_mid, C1+C2, 3);
    w2: (C_out, C_mid, 3); s*/b*: folded eval-mode BN scale/shift, shape (C,)."""
    N, C1, L1 = x1.shape
    N2, C2, L2 = x2.shape
    assert N2 == N
    C_in = C1 + C2
    C_mid, C_out = w1.shape[0], w2.shape[0]
    assert w1.shape == (C_mid, C_in, 3) and w2.shape == (C_out, C_mid, 3)
    act_dtype = jnp.dtype(x1.dtype if act_dtype is None else act_dtype)

    # Pad channel counts to the f32 sublane multiple (8): full vregs for h / output.
    C_mid_p = _round_up(C_mid, 8)
    C_out_p = _round_up(C_out, 8)

    # ---- tiling: batches stacked along lanes; W_blk = batch_block * L2p ----
    per_lane = (2 * (C1 + C2 + C_out_p) * act_dtype.itemsize        # double-buffered I/O
                + 4 * (C1 + C2 + 2 * C_mid_p + 2 * C_out_p) * 4)    # f32 in-kernel temps (headroom)
    batch_block, L2p = _pick_tiling(N, L2, per_lane, vmem_budget_bytes, target_lanes)
    W_blk = batch_block * L2p
    grid = (N // batch_block,)

    # ---- exact 1-D linear upsample x2 (align_corners=True), F.pad folded into gather ----
    Lup = 2 * L1
    diff = L2 - Lup
    assert diff >= 0, "L2 < 2*L1 (negative F.pad / crop) not supported"
    pad_lo = diff // 2
    jj = np.arange(Lup)
    scale = (L1 - 1) / (Lup - 1) if Lup > 1 else 0.0
    src = jj * scale
    i0 = np.floor(src).astype(np.int32)
    i1 = np.minimum(i0 + 1, L1 - 1)
    frac = (src - i0).astype(np.float32)
    i0_f = np.zeros(L2p, np.int32); i1_f = np.zeros(L2p, np.int32)
    c0_f = np.zeros(L2p, np.float32); c1_f = np.zeros(L2p, np.float32)
    i0_f[pad_lo:pad_lo + Lup] = i0; i1_f[pad_lo:pad_lo + Lup] = i1
    c0_f[pad_lo:pad_lo + Lup] = 1.0 - frac; c1_f[pad_lo:pad_lo + Lup] = frac
    c0 = jnp.asarray(c0_f).reshape(1, 1, L2p)
    c1 = jnp.asarray(c1_f).reshape(1, 1, L2p)

    # Channel-major slabs (C, N*L2p) so kernel stores are lane-dense.
    # TODO(synk): the x2 transpose and the final un-stacking transpose are the two
    # remaining extra HBM passes; elide them if neighbor layers produce/consume slabs.
    x1_t = jnp.transpose(x1, (1, 0, 2)).astype(jnp.float32)          # (C1, N, L1)
    x1u = (jnp.take(x1_t, jnp.asarray(i0_f), axis=2) * c0
           + jnp.take(x1_t, jnp.asarray(i1_f), axis=2) * c1)         # (C1, N, L2p)
    x1_slab = x1u.reshape(C1, N * L2p).astype(act_dtype)

    x2_t = jnp.transpose(x2, (1, 0, 2)).astype(act_dtype)            # (C2, N, L2)
    if L2p != L2:
        x2_t = jnp.pad(x2_t, ((0, 0), (0, 0), (0, L2p - L2)))
    x2_slab = x2_t.reshape(C2, N * L2p)

    # Per-batch conv boundary masks (period L2p; one grid-block's worth is enough).
    pos = np.arange(W_blk) % L2p
    mask_l = jnp.asarray((pos != 0).astype(np.float32)).reshape(1, W_blk)
    mask_r = jnp.asarray((pos != L2 - 1).astype(np.float32)).reshape(1, W_blk)

    # Fold BN scales into conv weights, split conv1 over [x2; x1] (concat order of the
    # module), zero-pad channels, stack the 3 taps on a leading axis: (3, C_out, C_in).
    w1f = (w1 * s1.reshape(C_mid, 1, 1)).astype(jnp.float32)
    w2f = (w2 * s2.reshape(C_out, 1, 1)).astype(jnp.float32)
    w1f = jnp.pad(w1f, ((0, C_mid_p - C_mid), (0, 0), (0, 0)))
    w2f = jnp.pad(w2f, ((0, C_out_p - C_out), (0, C_mid_p - C_mid), (0, 0)))
    w1a = jnp.transpose(w1f[:, :C2, :], (2, 0, 1))                   # (3, C_mid_p, C2)
    w1b = jnp.transpose(w1f[:, C2:, :], (2, 0, 1))                   # (3, C_mid_p, C1)
    w2s = jnp.transpose(w2f, (2, 0, 1))                              # (3, C_out_p, C_mid_p)
    b1c = jnp.pad(b1.astype(jnp.float32), (0, C_mid_p - C_mid)).reshape(C_mid_p, 1)
    b2c = jnp.pad(b2.astype(jnp.float32), (0, C_out_p - C_out)).reshape(C_out_p, 1)

    full = lambda *shape: pl.BlockSpec(shape, lambda g: (0,) * len(shape))
    out_slab = pl.pallas_call(
        up_kernel,
        out_shape=jax.ShapeDtypeStruct((C_out_p, N * L2p), act_dtype),
        grid=grid,
        in_specs=[
            pl.BlockSpec((C2, W_blk), lambda g: (0, g)),
            pl.BlockSpec((C1, W_blk), lambda g: (0, g)),
            full(1, W_blk),
            full(1, W_blk),
            full(3, C_mid_p, C2),
            full(3, C_mid_p, C1),
            full(C_mid_p, 1),
            full(3, C_out_p, C_mid_p),
            full(C_out_p, 1),
        ],
        out_specs=pl.BlockSpec((C_out_p, W_blk), lambda g: (0, g)),
        compiler_params=pltpu.CompilerParams(
            dimension_semantics=("parallel",),            # shards across v7x's 2 TCs
            vmem_limit_bytes=int(vmem_budget_bytes),      # explicit scoped-VMEM budget
        ),
    )(x2_slab, x1_slab, mask_l, mask_r, w1a, w1b, b1c, w2s, b2c)

    # Un-stack batches from the lane axis; drop channel / lane padding.
    out = out_slab.reshape(C_out_p, N, L2p)[:C_out, :, :L2]
    return jnp.transpose(out, (1, 0, 2)).astype(x1.dtype)


def up_reference(x1, x2, w1, w2, s1, b1, s2, b2):
    """Pure-JAX reference mirroring the PyTorch forward (eval-mode BN)."""
    N, C1, L1 = x1.shape
    L2 = x2.shape[2]
    Lup = 2 * L1
    j = jnp.arange(Lup)
    scale = (L1 - 1) / (Lup - 1) if Lup > 1 else 0.0
    src = j * scale
    i0 = jnp.floor(src).astype(jnp.int32)
    i1 = jnp.minimum(i0 + 1, L1 - 1)
    w = (src - i0).astype(x1.dtype)
    x1u = x1[:, :, i0] * (1.0 - w) + x1[:, :, i1] * w
    diff = L2 - Lup
    x1u = jnp.pad(x1u, ((0, 0), (0, 0), (diff // 2, diff - diff // 2)))
    x = jnp.concatenate([x2, x1u], axis=1)

    def conv_bn_relu(xx, wc, s, b):
        y = jax.lax.conv_general_dilated(
            xx, wc, window_strides=(1,), padding=((1, 1),),
            dimension_numbers=("NCH", "OIH", "NCH"))
        return jnp.maximum(y * s[None, :, None] + b[None, :, None], 0.0)

    h = conv_bn_relu(x, w1, s1, b1)
    return conv_bn_relu(h, w2, s2, b2)


if __name__ == "__main__":
    # Up(in_channels=8, out_channels=8, bilinear=True):
    #   x1: (N, 4, L1) from below, x2: (N, 4, L2) skip connection, L2 = 2*L1.
    # N=64 so the auto-tiler picks batch_block=32 -> 512 lanes per grid step and a
    # 2-step parallel grid (lane-dense stores; both v7x TensorCores get work).
    N, C1, C2, L1, L2 = 64, 4, 4, 8, 16
    C_in = C1 + C2
    C_mid = C_in // 2
    C_out = 8

    key = jax.random.PRNGKey(0)
    ks = jax.random.split(key, 12)
    x1 = jax.random.normal(ks[0], (N, C1, L1), jnp.float32)
    x2 = jax.random.normal(ks[1], (N, C2, L2), jnp.float32)

    # Conv weights (bias=False per the module) and BN params — deterministic init.
    w1 = 0.2 * jax.random.normal(ks[2], (C_mid, C_in, 3), jnp.float32)
    w2 = 0.2 * jax.random.normal(ks[3], (C_out, C_mid, 3), jnp.float32)

    g1 = 1.0 + 0.1 * jax.random.normal(ks[4], (C_mid,), jnp.float32)
    be1 = 0.1 * jax.random.normal(ks[5], (C_mid,), jnp.float32)
    rm1 = 0.1 * jax.random.normal(ks[6], (C_mid,), jnp.float32)
    rv1 = 1.0 + 0.1 * jnp.abs(jax.random.normal(ks[7], (C_mid,), jnp.float32))
    g2 = 1.0 + 0.1 * jax.random.normal(ks[8], (C_out,), jnp.float32)
    be2 = 0.1 * jax.random.normal(ks[9], (C_out,), jnp.float32)
    rm2 = 0.1 * jax.random.normal(ks[10], (C_out,), jnp.float32)
    rv2 = 1.0 + 0.1 * jnp.abs(jax.random.normal(ks[11], (C_out,), jnp.float32))

    inv1 = g1 / jnp.sqrt(rv1 + EPS)
    s1, b1 = inv1, be1 - rm1 * inv1
    inv2 = g2 / jnp.sqrt(rv2 + EPS)
    s2, b2 = inv2, be2 - rm2 * inv2

    ref = up_reference(x1, x2, w1, w2, s1, b1, s2, b2)

    # f32 activation path (exact).
    out = up_forward(x1, x2, w1, w2, s1, b1, s2, b2)
    out = jax.block_until_ready(out)
    assert out.shape == (N, C_out, L2), out.shape
    np.testing.assert_allclose(np.asarray(out), np.asarray(ref), rtol=1e-4, atol=1e-4)

    # bf16 activation-storage path: halves HBM/DMA bytes and VMEM (key lever on
    # v6e/v7x); in-kernel elementwise stays f32 so it is also valid on v5e.
    out_bf16 = up_forward(x1, x2, w1, w2, s1, b1, s2, b2, act_dtype=jnp.bfloat16)
    out_bf16 = jax.block_until_ready(out_bf16)
    np.testing.assert_allclose(np.asarray(out_bf16), np.asarray(ref), rtol=0.1, atol=0.1)

    print("KERNEL_OK")
</pallas_src>

<mosaic_0001>
module attributes {stable_mosaic.version = 11 : i64} {
  func.func @up_kernel(%arg0: i32, %arg1: memref<4x512xf32, #tpu.memory_space<vmem>>, %arg2: memref<4x512xf32, #tpu.memory_space<vmem>>, %arg3: memref<1x512xf32, #tpu.memory_space<vmem>>, %arg4: memref<1x512xf32, #tpu.memory_space<vmem>>, %arg5: memref<3x8x4xf32, #tpu.memory_space<vmem>>, %arg6: memref<3x8x4xf32, #tpu.memory_space<vmem>>, %arg7: memref<8x1xf32, #tpu.memory_space<vmem>>, %arg8: memref<3x8x8xf32, #tpu.memory_space<vmem>>, %arg9: memref<8x1xf32, #tpu.memory_space<vmem>>, %arg10: memref<8x512xf32, #tpu.memory_space<vmem>>) attributes {dimension_semantics = [#tpu.dimension_semantics<parallel>], iteration_bounds = array<i64: 2>, scalar_prefetch = 0 : i64, scratch_operands = 0 : i64, tpu.core_type = #tpu.core_type<tc>, window_params = [{transform_indices = @transform_0, window_bounds = array<i64: 4, 512>}, {transform_indices = @transform_1, window_bounds = array<i64: 4, 512>}, {pipeline_mode = #tpu.pipeline_mode<synchronous>, transform_indices = @transform_2, window_bounds = array<i64: 1, 512>}, {pipeline_mode = #tpu.pipeline_mode<synchronous>, transform_indices = @transform_3, window_bounds = array<i64: 1, 512>}, {pipeline_mode = #tpu.pipeline_mode<synchronous>, transform_indices = @transform_4, window_bounds = array<i64: 3, 8, 4>}, {pipeline_mode = #tpu.pipeline_mode<synchronous>, transform_indices = @transform_5, window_bounds = array<i64: 3, 8, 4>}, {pipeline_mode = #tpu.pipeline_mode<synchronous>, transform_indices = @transform_6, window_bounds = array<i64: 8, 1>}, {pipeline_mode = #tpu.pipeline_mode<synchronous>, transform_indices = @transform_7, window_bounds = array<i64: 3, 8, 8>}, {pipeline_mode = #tpu.pipeline_mode<synchronous>, transform_indices = @transform_8, window_bounds = array<i64: 8, 1>}, {transform_indices = @transform_9, window_bounds = array<i64: 8, 512>}]} {
    %c0 = arith.constant 0 : index
    %c0_0 = arith.constant 0 : index
    %0 = vector.load %arg3[%c0, %c0_0] : memref<1x512xf32, #tpu.memory_space<vmem>>, vector<1x512xf32>
    %c0_1 = arith.constant 0 : index
    %c0_2 = arith.constant 0 : index
    %1 = vector.load %arg4[%c0_1, %c0_2] : memref<1x512xf32, #tpu.memory_space<vmem>>, vector<1x512xf32>
    %c0_3 = arith.constant 0 : index
    %c0_4 = arith.constant 0 : index
    %2 = vector.load %arg1[%c0_3, %c0_4] : memref<4x512xf32, #tpu.memory_space<vmem>>, vector<4x512xf32>
    %c0_5 = arith.constant 0 : index
    %c0_6 = arith.constant 0 : index
    %3 = vector.load %arg2[%c0_5, %c0_6] : memref<4x512xf32, #tpu.memory_space<vmem>>, vector<4x512xf32>
    %c1_i32 = arith.constant 1 : i32
    %4 = tpu.dynamic_rotate %2 by %c1_i32 dim 1 : vector<4x512xf32>, i32 -> vector<4x512xf32>
    %5 = vector.broadcast %0 : vector<1x512xf32> to vector<4x512xf32>
    %6 = arith.mulf %5, %4 : vector<4x512xf32>
    %c511_i32 = arith.constant 511 : i32
    %7 = tpu.dynamic_rotate %2 by %c511_i32 dim 1 : vector<4x512xf32>, i32 -> vector<4x512xf32>
    %8 = vector.broadcast %1 : vector<1x512xf32> to vector<4x512xf32>
    %9 = arith.mulf %8, %7 : vector<4x512xf32>
    %c0_7 = arith.constant 0 : index
    %c0_8 = arith.constant 0 : index
    %c0_9 = arith.constant 0 : index
    %10 = vector.load %arg5[%c0_7, %c0_8, %c0_9] : memref<3x8x4xf32, #tpu.memory_space<vmem>>, vector<1x8x4xf32>
    %11 = vector.shape_cast %10 : vector<1x8x4xf32> to vector<8x4xf32>
    %cst = arith.constant dense<0.000000e+00> : vector<8x512xf32>
    %12 = tpu.matmul %11, %6, %cst {dimension_numbers = #tpu.dot_dimension_numbers<[1], [0], [0], [1], [0, 0, 1, 1], [], []>} : vector<8x4xf32>, vector<4x512xf32>, vector<8x512xf32> -> vector<8x512xf32>
    %c1 = arith.constant 1 : index
    %c0_10 = arith.constant 0 : index
    %c0_11 = arith.constant 0 : index
    %13 = vector.load %arg5[%c1, %c0_10, %c0_11] : memref<3x8x4xf32, #tpu.memory_space<vmem>>, vector<1x8x4xf32>
    %14 = vector.shape_cast %13 : vector<1x8x4xf32> to vector<8x4xf32>
    %cst_12 = arith.constant dense<0.000000e+00> : vector<8x512xf32>
    %15 = tpu.matmul %14, %2, %cst_12 {dimension_numbers = #tpu.dot_dimension_numbers<[1], [0], [0], [1], [0, 0, 1, 1], [], []>} : vector<8x4xf32>, vector<4x512xf32>, vector<8x512xf32> -> vector<8x512xf32>
    %16 = arith.addf %12, %15 : vector<8x512xf32>
    %c2 = arith.constant 2 : index
    %c0_13 = arith.constant 0 : index
    %c0_14 = arith.constant 0 : index
    %17 = vector.load %arg5[%c2, %c0_13, %c0_14] : memref<3x8x4xf32, #tpu.memory_space<vmem>>, vector<1x8x4xf32>
    %18 = vector.shape_cast %17 : vector<1x8x4xf32> to vector<8x4xf32>
    %cst_15 = arith.constant dense<0.000000e+00> : vector<8x512xf32>
    %19 = tpu.matmul %18, %9, %cst_15 {dimension_numbers = #tpu.dot_dimension_numbers<[1], [0], [0], [1], [0, 0, 1, 1], [], []>} : vector<8x4xf32>, vector<4x512xf32>, vector<8x512xf32> -> vector<8x512xf32>
    %20 = arith.addf %16, %19 : vector<8x512xf32>
    %c1_i32_16 = arith.constant 1 : i32
    %21 = tpu.dynamic_rotate %3 by %c1_i32_16 dim 1 : vector<4x512xf32>, i32 -> vector<4x512xf32>
    %22 = vector.broadcast %0 : vector<1x512xf32> to vector<4x512xf32>
    %23 = arith.mulf %22, %21 : vector<4x512xf32>
    %c511_i32_17 = arith.constant 511 : i32
    %24 = tpu.dynamic_rotate %3 by %c511_i32_17 dim 1 : vector<4x512xf32>, i32 -> vector<4x512xf32>
    %25 = vector.broadcast %1 : vector<1x512xf32> to vector<4x512xf32>
    %26 = arith.mulf %25, %24 : vector<4x512xf32>
    %c0_18 = arith.constant 0 : index
    %c0_19 = arith.constant 0 : index
    %c0_20 = arith.constant 0 : index
    %27 = vector.load %arg6[%c0_18, %c0_19, %c0_20] : memref<3x8x4xf32, #tpu.memory_space<vmem>>, vector<1x8x4xf32>
    %28 = vector.shape_cast %27 : vector<1x8x4xf32> to vector<8x4xf32>
    %cst_21 = arith.constant dense<0.000000e+00> : vector<8x512xf32>
    %29 = tpu.matmul %28, %23, %cst_21 {dimension_numbers = #tpu.dot_dimension_numbers<[1], [0], [0], [1], [0, 0, 1, 1], [], []>} : vector<8x4xf32>, vector<4x512xf32>, vector<8x512xf32> -> vector<8x512xf32>
    %c1_22 = arith.constant 1 : index
    %c0_23 = arith.constant 0 : index
    %c0_24 = arith.constant 0 : index
    %30 = vector.load %arg6[%c1_22, %c0_23, %c0_24] : memref<3x8x4xf32, #tpu.memory_space<vmem>>, vector<1x8x4xf32>
    %31 = vector.shape_cast %30 : vector<1x8x4xf32> to vector<8x4xf32>
    %cst_25 = arith.constant dense<0.000000e+00> : vector<8x512xf32>
    %32 = tpu.matmul %31, %3, %cst_25 {dimension_numbers = #tpu.dot_dimension_numbers<[1], [0], [0], [1], [0, 0, 1, 1], [], []>} : vector<8x4xf32>, vector<4x512xf32>, vector<8x512xf32> -> vector<8x512xf32>
    %33 = arith.addf %29, %32 : vector<8x512xf32>
    %c2_26 = arith.constant 2 : index
    %c0_27 = arith.constant 0 : index
    %c0_28 = arith.constant 0 : index
    %34 = vector.load %arg6[%c2_26, %c0_27, %c0_28] : memref<3x8x4xf32, #tpu.memory_space<vmem>>, vector<1x8x4xf32>
    %35 = vector.shape_cast %34 : vector<1x8x4xf32> to vector<8x4xf32>
    %cst_29 = arith.constant dense<0.000000e+00> : vector<8x512xf32>
    %36 = tpu.matmul %35, %26, %cst_29 {dimension_numbers = #tpu.dot_dimension_numbers<[1], [0], [0], [1], [0, 0, 1, 1], [], []>} : vector<8x4xf32>, vector<4x512xf32>, vector<8x512xf32> -> vector<8x512xf32>
    %37 = arith.addf %33, %36 : vector<8x512xf32>
    %38 = arith.addf %20, %37 : vector<8x512xf32>
    %c0_30 = arith.constant 0 : index
    %c0_31 = arith.constant 0 : index
    %39 = vector.load %arg7[%c0_30, %c0_31] : memref<8x1xf32, #tpu.memory_space<vmem>>, vector<8x1xf32>
    %40 = vector.broadcast %39 : vector<8x1xf32> to vector<8x512xf32>
    %41 = arith.addf %38, %40 : vector<8x512xf32>
    %cst_32 = arith.constant 0.000000e+00 : f32
    %42 = vector.broadcast %cst_32 : f32 to vector<8x512xf32>
    %43 = arith.maximumf %41, %42 : vector<8x512xf32>
    %c1_i32_33 = arith.constant 1 : i32
    %44 = tpu.dynamic_rotate %43 by %c1_i32_33 dim 1 : vector<8x512xf32>, i32 -> vector<8x512xf32>
    %45 = vector.broadcast %0 : vector<1x512xf32> to vector<8x512xf32>
    %46 = arith.mulf %45, %44 : vector<8x512xf32>
    %c511_i32_34 = arith.constant 511 : i32
    %47 = tpu.dynamic_rotate %43 by %c511_i32_34 dim 1 : vector<8x512xf32>, i32 -> vector<8x512xf32>
    %48 = vector.broadcast %1 : vector<1x512xf32> to vector<8x512xf32>
    %49 = arith.mulf %48, %47 : vector<8x512xf32>
    %c0_35 = arith.constant 0 : index
    %c0_36 = arith.constant 0 : index
    %c0_37 = arith.constant 0 : index
    %50 = vector.load %arg8[%c0_35, %c0_36, %c0_37] : memref<3x8x8xf32, #tpu.memory_space<vmem>>, vector<1x8x8xf32>
    %51 = vector.shape_cast %50 : vector<1x8x8xf32> to vector<8x8xf32>
    %cst_38 = arith.constant dense<0.000000e+00> : vector<8x512xf32>
    %52 = tpu.matmul %51, %46, %cst_38 {dimension_numbers = #tpu.dot_dimension_numbers<[1], [0], [0], [1], [0, 0, 1, 1], [], []>} : vector<8x8xf32>, vector<8x512xf32>, vector<8x512xf32> -> vector<8x512xf32>
    %c1_39 = arith.constant 1 : index
    %c0_40 = arith.constant 0 : index
    %c0_41 = arith.constant 0 : index
    %53 = vector.load %arg8[%c1_39, %c0_40, %c0_41] : memref<3x8x8xf32, #tpu.memory_space<vmem>>, vector<1x8x8xf32>
    %54 = vector.shape_cast %53 : vector<1x8x8xf32> to vector<8x8xf32>
    %cst_42 = arith.constant dense<0.000000e+00> : vector<8x512xf32>
    %55 = tpu.matmul %54, %43, %cst_42 {dimension_numbers = #tpu.dot_dimension_numbers<[1], [0], [0], [1], [0, 0, 1, 1], [], []>} : vector<8x8xf32>, vector<8x512xf32>, vector<8x512xf32> -> vector<8x512xf32>
    %56 = arith.addf %52, %55 : vector<8x512xf32>
    %c2_43 = arith.constant 2 : index
    %c0_44 = arith.constant 0 : index
    %c0_45 = arith.constant 0 : index
    %57 = vector.load %arg8[%c2_43, %c0_44, %c0_45] : memref<3x8x8xf32, #tpu.memory_space<vmem>>, vector<1x8x8xf32>
    %58 = vector.shape_cast %57 : vector<1x8x8xf32> to vector<8x8xf32>
    %cst_46 = arith.constant dense<0.000000e+00> : vector<8x512xf32>
    %59 = tpu.matmul %58, %49, %cst_46 {dimension_numbers = #tpu.dot_dimension_numbers<[1], [0], [0], [1], [0, 0, 1, 1], [], []>} : vector<8x8xf32>, vector<8x512xf32>, vector<8x512xf32> -> vector<8x512xf32>
    %60 = arith.addf %56, %59 : vector<8x512xf32>
    %c0_47 = arith.constant 0 : index
    %c0_48 = arith.constant 0 : index
    %61 = vector.load %arg9[%c0_47, %c0_48] : memref<8x1xf32, #tpu.memory_space<vmem>>, vector<8x1xf32>
    %62 = vector.broadcast %61 : vector<8x1xf32> to vector<8x512xf32>
    %63 = arith.addf %60, %62 : vector<8x512xf32>
    %cst_49 = arith.constant 0.000000e+00 : f32
    %64 = vector.broadcast %cst_49 : f32 to vector<8x512xf32>
    %65 = arith.maximumf %63, %64 : vector<8x512xf32>
    %c0_50 = arith.constant 0 : index
    %c0_51 = arith.constant 0 : index
    %66 = vector.load %arg10[%c0_50, %c0_51] : memref<8x512xf32, #tpu.memory_space<vmem>>, vector<8x512xf32>
    tpu.vector_store %arg10[%c0_50, %c0_51], %65 {strides = array<i32>} : memref<8x512xf32, #tpu.memory_space<vmem>>, vector<8x512xf32>,
    return
  }
  func.func @transform_0(%arg0: i32) -> (i32, i32) {
    %c0_i32 = arith.constant 0 : i32
    %c0_i32_0 = arith.constant 0 : i32
    return %c0_i32, %arg0 : i32, i32
  }
  func.func @transform_1(%arg0: i32) -> (i32, i32) {
    %c0_i32 = arith.constant 0 : i32
    %c0_i32_0 = arith.constant 0 : i32
    return %c0_i32, %arg0 : i32, i32
  }
  func.func @transform_2(%arg0: i32) -> (i32, i32) {
    %c0_i32 = arith.constant 0 : i32
    %c0_i32_0 = arith.constant 0 : i32
    %c0_i32_1 = arith.constant 0 : i32
    return %c0_i32, %c0_i32_0 : i32, i32
  }
  func.func @transform_3(%arg0: i32) -> (i32, i32) {
    %c0_i32 = arith.constant 0 : i32
    %c0_i32_0 = arith.constant 0 : i32
    %c0_i32_1 = arith.constant 0 : i32
    return %c0_i32, %c0_i32_0 : i32, i32
  }
  func.func @transform_4(%arg0: i32) -> (i32, i32, i32) {
    %c0_i32 = arith.constant 0 : i32
    %c0_i32_0 = arith.constant 0 : i32
    %c0_i32_1 = arith.constant 0 : i32
    %c0_i32_2 = arith.constant 0 : i32
    return %c0_i32, %c0_i32_0, %c0_i32_1 : i32, i32, i32
  }
  func.func @transform_5(%arg0: i32) -> (i32, i32, i32) {
    %c0_i32 = arith.constant 0 : i32
    %c0_i32_0 = arith.constant 0 : i32
    %c0_i32_1 = arith.constant 0 : i32
    %c0_i32_2 = arith.constant 0 : i32
    return %c0_i32, %c0_i32_0, %c0_i32_1 : i32, i32, i32
  }
  func.func @transform_6(%arg0: i32) -> (i32, i32) {
    %c0_i32 = arith.constant 0 : i32
    %c0_i32_0 = arith.constant 0 : i32
    %c0_i32_1 = arith.constant 0 : i32
    return %c0_i32, %c0_i32_0 : i32, i32
  }
  func.func @transform_7(%arg0: i32) -> (i32, i32, i32) {
    %c0_i32 = arith.constant 0 : i32
    %c0_i32_0 = arith.constant 0 : i32
    %c0_i32_1 = arith.constant 0 : i32
    %c0_i32_2 = arith.constant 0 : i32
    return %c0_i32, %c0_i32_0, %c0_i32_1 : i32, i32, i32
  }
  func.func @transform_8(%arg0: i32) -> (i32, i32) {
    %c0_i32 = arith.constant 0 : i32
    %c0_i32_0 = arith.constant 0 : i32
    %c0_i32_1 = arith.constant 0 : i32
    return %c0_i32, %c0_i32_0 : i32, i32
  }
  func.func @transform_9(%arg0: i32) -> (i32, i32) {
    %c0_i32 = arith.constant 0 : i32
    %c0_i32_0 = arith.constant 0 : i32
    return %c0_i32, %arg0 : i32, i32
  }
}

</mosaic_0001>

<llo_original>
// kernel: tpu_custom_call.1
$region0: #{tpu_custom_call.1}
  #allocation0 [shape = 'u32[]', space=smem, size = 0x4, offset = 0x4, fixed_abs, tag = 'smem constant byte address 0x4 - core index']
  #allocation1 [shape = 'u32[144,128]{1,0:T(1,128)}', space=vmem, size = 0x12000, scoped, tag = 'internal scratch']
  %s0 = inlined_call_operand.vmem [shape: f32[4,1024], index: 0, kind: input, shape index: {}]
  %s1 = inlined_call_operand.vmem [shape: f32[4,1024], index: 1, kind: input, shape index: {}]
  %s2 = inlined_call_operand.hbm [shape: f32[1,512], index: 2, kind: input, shape index: {}]
  %s3 = inlined_call_operand.hbm [shape: f32[1,512], index: 3, kind: input, shape index: {}]
  %s4 = inlined_call_operand.vmem [shape: f32[3,8,4], index: 4, kind: input, shape index: {}]
  %s5 = inlined_call_operand.vmem [shape: f32[3,8,4], index: 5, kind: input, shape index: {}]
  %s6 = inlined_call_operand.vmem [shape: f32[8,1], index: 6, kind: input, shape index: {}]
  %s7 = inlined_call_operand.vmem [shape: f32[3,8,8], index: 7, kind: input, shape index: {}]
  %s8 = inlined_call_operand.vmem [shape: f32[8,1], index: 8, kind: input, shape index: {}]
  %s9 = inlined_call_operand.hbm [shape: f32[8,1024], index: 9, kind: output, shape index: {}]
  %s10 = sld [smem:[#allocation0]]
  $region77: #{tpu_custom_call.1} parent=0
    _
  %s12 = ssub.s32 1, %s10
  %s13 = scalar_select 0, %s12, %s10
  $region1: #{tpu_custom_call.1} parent=0
    #allocation2 [shape = 'u8[2048]{0}', space=vmem, size = 0x800, scoped, tag = 'input window, operand 2, single buffered']
    #allocation3 [shape = 's32[2]{0}', space=sflag, size = 0x8, scoped, tag = 'scoped memory for tpu_custom_call.1']
    #allocation4 [shape = 's32[2]{0}', space=sflag, size = 0x8, scoped, tag = 'scoped memory for tpu_custom_call.1']
    #allocation5 [shape = 'u8[2048]{0}', space=vmem, size = 0x800, scoped, tag = 'input window, operand 3, single buffered']
    #allocation6 [shape = 's32[1]{0}', space=sflag, size = 0x4, scoped, tag = 'scoped memory for tpu_custom_call.1']
    #allocation7 [shape = 'u8[32768]{0}', space=vmem, size = 0x8000, scoped, tag = 'output window, operand 0']
    %14 = vsyncpa [#allocation3], 0
    %15 = vsyncpa [#allocation6], 0
    %16 = vsyncpa [#allocation4], 0
    %s17 = scalar_lea.sflag [#allocation4], 1
    %18 = vsyncpa %s17, 0
    loop: start=0, step=1, limit=4
    $region2: #{tpu_custom_call.1} parent=1 // loop_pre_header
      _
    $region3: #{tpu_custom_call.1} parent=1 // loop_header
      %s20 = sphi 0, %s24
      %p21 = scmp.ge.s32.totalorder %s20, 4
      %s30 = sphi 0, %s32
      %s33 = sphi 0, %s30
      %s34 = sphi 0, %s33
      %s50 = sphi 0, %s34
      %s56 = sphi 0, %s58
      %s59 = sphi 0, %s56
      %s60 = sphi 0, %s59
      %s76 = sphi 0, %s60
      %s80 = sphi 0, %s80
      %s82 = sphi 0, %s80
      %s83 = sphi 0, %s82
      %s97 = sphi 0, %s83
      %s101 = sphi 0, %s101
      %s103 = sphi 0, %s101
      %s104 = sphi 0, %s103
      %s118 = sphi 0, %s104
      %s122 = sphi 0, %s122
      %s124 = sphi 0, %s122
      %s125 = sphi 0, %s124
      %s139 = sphi 0, %s125
      %s143 = sphi 0, %s143
      %s145 = sphi 0, %s143
      %s146 = sphi 0, %s145
      %s160 = sphi 0, %s146
      %s164 = sphi 0, %s164
      %s166 = sphi 0, %s164
      %s167 = sphi 0, %s166
      %s181 = sphi 0, %s167
      %s185 = sphi 0, %s185
      %s187 = sphi 0, %s185
      %s188 = sphi 0, %s187
      %s202 = sphi 0, %s188
      %s206 = sphi 0, %s206
      %s208 = sphi 0, %s206
      %s209 = sphi 0, %s208
      %s223 = sphi 0, %s209
      %s229 = sphi 0, %s231
      %s232 = sphi 0, %s229
      %s233 = sphi 0, %s232
      %s249 = sphi 0, %s233
    $region4: #{tpu_custom_call.1} parent=1 // loop_header_branch
      %23 = sbr.rel (%p21) target = $region8
    $region5: #{tpu_custom_call.1} parent=1 // loop_body
      %s25 = ssub.s32 %s20, 1
      %s26 = ssub.s32 %s20, 2
      %s27 = sadd.s32 %s20, 1
      %s28 = ssub.s32 %s20, %s27
      %p29 = scmp.eq.s32.totalorder %s28, 0
      %s31 = sadd.s32 %s30, 1
      %s32 = scalar_select %p29, %s30, %s31
      %p35 = pneg %p29
      %p36 = scmp.eq.s32.totalorder %s20, 1
      %p37 = por %p35, %p36
      %p38 = scmp.ne.s32.totalorder %s30, %s33
      %p39 = scmp.eq.s32.totalorder %s20, 0
      %p40 = por %p38, %p39
      %p41 = scmp.ne.s32.totalorder %s30, %s33
      %p42 = scmp.eq.s32.totalorder %s25, 1
      %p43 = por %p41, %p42
      %p44 = scmp.ne.s32.totalorder %s33, %s34
      %p45 = scmp.eq.s32.totalorder %s25, 0
      %p46 = por %p44, %p45
      %p47 = scmp.ne.s32.totalorder %s33, %s34
      %p48 = scmp.eq.s32.totalorder %s26, 1
      %p49 = por %p47, %p48
      %p51 = scmp.ne.s32.totalorder %s34, %s50
      %p52 = scmp.eq.s32.totalorder %s26, 0
      %p53 = por %p51, %p52
      %s54 = ssub.s32 %s20, %s27
      %p55 = scmp.eq.s32.totalorder %s54, 0
      %s57 = sadd.s32 %s56, 1
      %s58 = scalar_select %p55, %s56, %s57
      %p61 = pneg %p55
      %p62 = scmp.eq.s32.totalorder %s20, 1
      %p63 = por %p61, %p62
      %p64 = scmp.ne.s32.totalorder %s56, %s59
      %p65 = scmp.eq.s32.totalorder %s20, 0
      %p66 = por %p64, %p65
      %p67 = scmp.ne.s32.totalorder %s56, %s59
      %p68 = scmp.eq.s32.totalorder %s25, 1
      %p69 = por %p67, %p68
      %p70 = scmp.ne.s32.totalorder %s59, %s60
      %p71 = scmp.eq.s32.totalorder %s25, 0
      %p72 = por %p70, %p71
      %p73 = scmp.ne.s32.totalorder %s59, %s60
      %p74 = scmp.eq.s32.totalorder %s26, 1
      %p75 = por %p73, %p74
      %p77 = scmp.ne.s32.totalorder %s60, %s76
      %p78 = scmp.eq.s32.totalorder %s26, 0
      %p79 = por %p77, %p78
      %s81 = sadd.s32 %s80, 1
      %p84 = scmp.eq.s32.totalorder %s20, 1
      %p85 = scmp.ne.s32.totalorder %s80, %s82
      %p86 = scmp.eq.s32.totalorder %s20, 0
      %p87 = por %p85, %p86
      %p88 = scmp.ne.s32.totalorder %s80, %s82
      %p89 = scmp.eq.s32.totalorder %s25, 1
      %p90 = por %p88, %p89
      %p91 = scmp.ne.s32.totalorder %s82, %s83
      %p92 = scmp.eq.s32.totalorder %s25, 0
      %p93 = por %p91, %p92
      %p94 = scmp.ne.s32.totalorder %s82, %s83
      %p95 = scmp.eq.s32.totalorder %s26, 1
      %p96 = por %p94, %p95
      %p98 = scmp.ne.s32.totalorder %s83, %s97
      %p99 = scmp.eq.s32.totalorder %s26, 0
      %p100 = por %p98, %p99
      %s102 = sadd.s32 %s101, 1
      %p105 = scmp.eq.s32.totalorder %s20, 1
      %p106 = scmp.ne.s32.totalorder %s101, %s103
      %p107 = scmp.eq.s32.totalorder %s20, 0
      %p108 = por %p106, %p107
      %p109 = scmp.ne.s32.totalorder %s101, %s103
      %p110 = scmp.eq.s32.totalorder %s25, 1
      %p111 = por %p109, %p110
      %p112 = scmp.ne.s32.totalorder %s103, %s104
      %p113 = scmp.eq.s32.totalorder %s25, 0
      %p114 = por %p112, %p113
      %p115 = scmp.ne.s32.totalorder %s103, %s104
      %p116 = scmp.eq.s32.totalorder %s26, 1
      %p117 = por %p115, %p116
      %p119 = scmp.ne.s32.totalorder %s104, %s118
      %p120 = scmp.eq.s32.totalorder %s26, 0
      %p121 = por %p119, %p120
      %s123 = sadd.s32 %s122, 1
      %p126 = scmp.eq.s32.totalorder %s20, 1
      %p127 = scmp.ne.s32.totalorder %s122, %s124
      %p128 = scmp.eq.s32.totalorder %s20, 0
      %p129 = por %p127, %p128
      %p130 = scmp.ne.s32.totalorder %s122, %s124
      %p131 = scmp.eq.s32.totalorder %s25, 1
      %p132 = por %p130, %p131
      %p133 = scmp.ne.s32.totalorder %s124, %s125
      %p134 = scmp.eq.s32.totalorder %s25, 0
      %p135 = por %p133, %p134
      %p136 = scmp.ne.s32.totalorder %s124, %s125
      %p137 = scmp.eq.s32.totalorder %s26, 1
      %p138 = por %p136, %p137
      %p140 = scmp.ne.s32.totalorder %s125, %s139
      %p141 = scmp.eq.s32.totalorder %s26, 0
      %p142 = por %p140, %p141
      %s144 = sadd.s32 %s143, 1
      %p147 = scmp.eq.s32.totalorder %s20, 1
      %p148 = scmp.ne.s32.totalorder %s143, %s145
      %p149 = scmp.eq.s32.totalorder %s20, 0
      %p150 = por %p148, %p149
      %p151 = scmp.ne.s32.totalorder %s143, %s145
      %p152 = scmp.eq.s32.totalorder %s25, 1
      %p153 = por %p151, %p152
      %p154 = scmp.ne.s32.totalorder %s145, %s146
      %p155 = scmp.eq.s32.totalorder %s25, 0
      %p156 = por %p154, %p155
      %p157 = scmp.ne.s32.totalorder %s145, %s146
      %p158 = scmp.eq.s32.totalorder %s26, 1
      %p159 = por %p157, %p158
      %p161 = scmp.ne.s32.totalorder %s146, %s160
      %p162 = scmp.eq.s32.totalorder %s26, 0
      %p163 = por %p161, %p162
      %s165 = sadd.s32 %s164, 1
      %p168 = scmp.eq.s32.totalorder %s20, 1
      %p169 = scmp.ne.s32.totalorder %s164, %s166
      %p170 = scmp.eq.s32.totalorder %s20, 0
      %p171 = por %p169, %p170
      %p172 = scmp.ne.s32.totalorder %s164, %s166
      %p173 = scmp.eq.s32.totalorder %s25, 1
      %p174 = por %p172, %p173
      %p175 = scmp.ne.s32.totalorder %s166, %s167
      %p176 = scmp.eq.s32.totalorder %s25, 0
      %p177 = por %p175, %p176
      %p178 = scmp.ne.s32.totalorder %s166, %s167
      %p179 = scmp.eq.s32.totalorder %s26, 1
      %p180 = por %p178, %p179
      %p182 = scmp.ne.s32.totalorder %s167, %s181
      %p183 = scmp.eq.s32.totalorder %s26, 0
      %p184 = por %p182, %p183
      %s186 = sadd.s32 %s185, 1
      %p189 = scmp.eq.s32.totalorder %s20, 1
      %p190 = scmp.ne.s32.totalorder %s185, %s187
      %p191 = scmp.eq.s32.totalorder %s20, 0
      %p192 = por %p190, %p191
      %p193 = scmp.ne.s32.totalorder %s185, %s187
      %p194 = scmp.eq.s32.totalorder %s25, 1
      %p195 = por %p193, %p194
      %p196 = scmp.ne.s32.totalorder %s187, %s188
      %p197 = scmp.eq.s32.totalorder %s25, 0
      %p198 = por %p196, %p197
      %p199 = scmp.ne.s32.totalorder %s187, %s188
      %p200 = scmp.eq.s32.totalorder %s26, 1
      %p201 = por %p199, %p200
      %p203 = scmp.ne.s32.totalorder %s188, %s202
      %p204 = scmp.eq.s32.totalorder %s26, 0
      %p205 = por %p203, %p204
      %s207 = sadd.s32 %s206, 1
      %p210 = scmp.eq.s32.totalorder %s20, 1
      %p211 = scmp.ne.s32.totalorder %s206, %s208
      %p212 = scmp.eq.s32.totalorder %s20, 0
      %p213 = por %p211, %p212
      %p214 = scmp.ne.s32.totalorder %s206, %s208
      %p215 = scmp.eq.s32.totalorder %s25, 1
      %p216 = por %p214, %p215
      %p217 = scmp.ne.s32.totalorder %s208, %s209
      %p218 = scmp.eq.s32.totalorder %s25, 0
      %p219 = por %p217, %p218
      %p220 = scmp.ne.s32.totalorder %s208, %s209
      %p221 = scmp.eq.s32.totalorder %s26, 1
      %p222 = por %p220, %p221
      %p224 = scmp.ne.s32.totalorder %s209, %s223
      %p225 = scmp.eq.s32.totalorder %s26, 0
      %p226 = por %p224, %p225
      %s227 = ssub.s32 %s20, %s27
      %p228 = scmp.eq.s32.totalorder %s227, 0
      %s230 = sadd.s32 %s229, 1
      %s231 = scalar_select %p228, %s229, %s230
      %p234 = pneg %p228
      %p235 = scmp.eq.s32.totalorder %s20, 1
      %p236 = por %p234, %p235
      %p237 = scmp.ne.s32.totalorder %s229, %s232
      %p238 = scmp.eq.s32.totalorder %s20, 0
      %p239 = por %p237, %p238
      %p240 = scmp.ne.s32.totalorder %s229, %s232
      %p241 = scmp.eq.s32.totalorder %s25, 1
      %p242 = por %p240, %p241
      %p243 = scmp.ne.s32.totalorder %s232, %s233
      %p244 = scmp.eq.s32.totalorder %s25, 0
      %p245 = por %p243, %p244
      %p246 = scmp.ne.s32.totalorder %s232, %s233
      %p247 = scmp.eq.s32.totalorder %s26, 1
      %p248 = por %p246, %p247
      %p250 = scmp.ne.s32.totalorder %s233, %s249
      %p251 = scmp.eq.s32.totalorder %s26, 0
      %p252 = por %p250, %p251
      %p253 = scmp.le.s32.totalorder 1, %s20
      %p254 = scmp.lt.s32.totalorder %s20, 3
      %p255 = pnand %p253, %p254
      %p256 = pneg %p255
      // Predicated region
      $region9: #{tpu_custom_call.1} parent=5 // pred_check
        _
      $region10: #{tpu_custom_call.1} parent=5 // pred_check_branch
        %258 = sbr.rel (%p255) target = $region12
      $region11: #{tpu_custom_call.1} parent=5 // pred_region
        %s259 = ssub.s32 %s20, 1
        // Predicated region
        $region13: #{tpu_custom_call.1} parent=11 // pred_check
          %p260 = pneg %p93
        $region14: #{tpu_custom_call.1} parent=11 // pred_check_branch
          %262 = sbr.rel (%p260) target = $region16
        $region15: #{tpu_custom_call.1} parent=11 // pred_region
          %s264 = ssub.s32 64, 64
          %265 = vsyncadd [#allocation3], %s264
          %s267 = sshll.u32 [#allocation2], 4
          %s268 = int_to_ptr.vmem [resolvable:$true] %s267
          %270 = dma.hbm_to_vmem [thread:$0]  %s2, 64, %s268, [#allocation3]
        $region16: #{tpu_custom_call.1} parent=11 // pred_fallthru
          _
        // Predicated region
        $region17: #{tpu_custom_call.1} parent=11 // pred_check
          %p271 = pneg %p114
        $region18: #{tpu_custom_call.1} parent=11 // pred_check_branch
          %273 = sbr.rel (%p271) target = $region20
        $region19: #{tpu_custom_call.1} parent=11 // pred_region
          %s275 = ssub.s32 64, 64
          %276 = vsyncadd [#allocation6], %s275
          %s278 = sshll.u32 [#allocation5], 4
          %s279 = int_to_ptr.vmem [resolvable:$true] %s278
          %281 = dma.hbm_to_vmem [thread:$0]  %s3, 64, %s279, [#allocation6]
        $region20: #{tpu_custom_call.1} parent=11 // pred_fallthru
          _
        // Predicated region
        $region21: #{tpu_custom_call.1} parent=11 // pred_check
          %p282 = pneg %p135
        $region22: #{tpu_custom_call.1} parent=11 // pred_check_branch
          %284 = sbr.rel (%p282) target = $region24
        $region23: #{tpu_custom_call.1} parent=11 // pred_region
          _
        $region24: #{tpu_custom_call.1} parent=11 // pred_fallthru
          _
        // Predicated region
        $region25: #{tpu_custom_call.1} parent=11 // pred_check
          %p285 = pneg %p156
        $region26: #{tpu_custom_call.1} parent=11 // pred_check_branch
          %287 = sbr.rel (%p285) target = $region28
        $region27: #{tpu_custom_call.1} parent=11 // pred_region
          _
        $region28: #{tpu_custom_call.1} parent=11 // pred_fallthru
          _
        // Predicated region
        $region29: #{tpu_custom_call.1} parent=11 // pred_check
          %p288 = pneg %p177
        $region30: #{tpu_custom_call.1} parent=11 // pred_check_branch
          %290 = sbr.rel (%p288) target = $region32
        $region31: #{tpu_custom_call.1} parent=11 // pred_region
          _
        $region32: #{tpu_custom_call.1} parent=11 // pred_fallthru
          _
        // Predicated region
        $region33: #{tpu_custom_call.1} parent=11 // pred_check
          %p291 = pneg %p198
        $region34: #{tpu_custom_call.1} parent=11 // pred_check_branch
          %293 = sbr.rel (%p291) target = $region36
        $region35: #{tpu_custom_call.1} parent=11 // pred_region
          _
        $region36: #{tpu_custom_call.1} parent=11 // pred_fallthru
          _
        // Predicated region
        $region37: #{tpu_custom_call.1} parent=11 // pred_check
          %p294 = pneg %p219
        $region38: #{tpu_custom_call.1} parent=11 // pred_check_branch
          %296 = sbr.rel (%p294) target = $region40
        $region39: #{tpu_custom_call.1} parent=11 // pred_region
          _
        $region40: #{tpu_custom_call.1} parent=11 // pred_fallthru
          _
      $region12: #{tpu_custom_call.1} parent=5 // pred_fallthru
        _
      %p297 = scmp.lt.s32.totalorder %s20, 2
      // Predicated region
      $region41: #{tpu_custom_call.1} parent=5 // pred_check
        %p298 = pneg %p297
      $region42: #{tpu_custom_call.1} parent=5 // pred_check_branch
        %300 = sbr.rel (%p298) target = $region44
      $region43: #{tpu_custom_call.1} parent=5 // pred_region
        // Predicated region
        $region45: #{tpu_custom_call.1} parent=43 // pred_check
          %p301 = pneg %p40
        $region46: #{tpu_custom_call.1} parent=43 // pred_check_branch
          %303 = sbr.rel (%p301) target = $region48
        $region47: #{tpu_custom_call.1} parent=43 // pred_region
          %s304 = smul.u32 4, %s20
          %p305 = scmp.lt.s32.totalorder %s304, 7
          %s306 = scalar_select %p305, %s304, 7
          %s307 = smul.addr %s306, 4
          %s308 = scalar_lea.vmem %s0, %s307
          %s309 = smul.u32 4, %s20
        $region48: #{tpu_custom_call.1} parent=43 // pred_fallthru
          _
        // Predicated region
        $region49: #{tpu_custom_call.1} parent=43 // pred_check
          %p310 = pneg %p66
        $region50: #{tpu_custom_call.1} parent=43 // pred_check_branch
          %312 = sbr.rel (%p310) target = $region52
        $region51: #{tpu_custom_call.1} parent=43 // pred_region
          %s313 = smul.u32 4, %s20
          %p314 = scmp.lt.s32.totalorder %s313, 7
          %s315 = scalar_select %p314, %s313, 7
          %s316 = smul.addr %s315, 4
          %s317 = scalar_lea.vmem %s1, %s316
          %s318 = smul.u32 4, %s20
        $region52: #{tpu_custom_call.1} parent=43 // pred_fallthru
          _
      $region44: #{tpu_custom_call.1} parent=5 // pred_fallthru
        _
      %p319 = scmp.le.s32.totalorder 1, %s20
      %p320 = scmp.lt.s32.totalorder %s20, 3
      %p321 = pnand %p319, %p320
      %p322 = pneg %p321
      // Predicated region
      $region53: #{tpu_custom_call.1} parent=5 // pred_check
        _
      $region54: #{tpu_custom_call.1} parent=5 // pred_check_branch
        %324 = sbr.rel (%p321) target = $region56
      $region55: #{tpu_custom_call.1} parent=5 // pred_region
        %s325 = ssub.s32 %s20, 1
        // Predicated region
        $region57: #{tpu_custom_call.1} parent=55 // pred_check
          %p326 = pneg %p93
        $region58: #{tpu_custom_call.1} parent=55 // pred_check_branch
          %328 = sbr.rel (%p326) target = $region60
        $region59: #{tpu_custom_call.1} parent=55 // pred_region
          %329 = dma.done [#allocation3], 64
        $region60: #{tpu_custom_call.1} parent=55 // pred_fallthru
          _
        // Predicated region
        $region61: #{tpu_custom_call.1} parent=55 // pred_check
          %p330 = pneg %p114
        $region62: #{tpu_custom_call.1} parent=55 // pred_check_branch
          %332 = sbr.rel (%p330) target = $region64
        $region63: #{tpu_custom_call.1} parent=55 // pred_region
          %333 = dma.done [#allocation6], 64
        $region64: #{tpu_custom_call.1} parent=55 // pred_fallthru
          _
        %s334 = smul.u32 4, %s25
        %p335 = scmp.lt.s32.totalorder %s334, 7
        %s336 = scalar_select %p335, %s334, 7
        %s337 = smul.addr %s336, 4
        %s338 = scalar_lea.vmem %s0, %s337
        %p339 = pneg %p46
        %p340 = pneg %p43
        %s341 = smul.u32 4, %s25
        %p342 = scmp.lt.s32.totalorder %s341, 7
        %s343 = scalar_select %p342, %s341, 7
        %s344 = smul.addr %s343, 4
        %s345 = scalar_lea.vmem %s1, %s344
        %p346 = pneg %p72
        %p347 = pneg %p69
        %p348 = pneg %p93
        %p349 = pneg %p90
        %p350 = pneg %p114
        %p351 = pneg %p111
        %p352 = pneg %p135
        %p353 = pneg %p132
        %p354 = pneg %p156
        %p355 = pneg %p153
        %p356 = pneg %p177
        %p357 = pneg %p174
        %p358 = pneg %p198
        %p359 = pneg %p195
        %p360 = pneg %p219
        %p361 = pneg %p216
        %p362 = pneg %p245
        %p363 = pneg %p242
        %s364 = sand.u32 %s232, 1
        %s365 = scalar_lea.sflag [#allocation4], %s364
        %s366 = sand.u32 %s232, 1
        %s367 = smul.addr %s366, 32
        %s368 = scalar_lea.vmem [#allocation7], %s367
        %s369 = smul.u32 4, %s25
        %p370 = scmp.lt.s32.totalorder %s369, 7
        %s371 = scalar_select %p370, %s369, 7
        %s372 = smul.addr %s371, 4
        %s373 = scalar_lea.vmem %s0, %s372
        %s374 = smul.u32 4, %s25
        %s375 = smul.u32 4, %s25
        %p376 = scmp.lt.s32.totalorder %s375, 7
        %s377 = scalar_select %p376, %s375, 7
        %s378 = smul.addr %s377, 4
        %s379 = scalar_lea.vmem %s1, %s378
        %s380 = smul.u32 4, %s25
        %s381 = smul.u32 4, %s25
        %v382 = vld [vmem:[#allocation2] sm:$0xf]
        %v383 = vld [vmem:[#allocation5] sm:$0xf]
        %v384 = vld [vmem:[%s373] sm:$0xff]
        %v385 = vld [vmem:[%s373 + $0x8] sm:$0xff]
        %v386 = vld [vmem:[%s379] sm:$0xff]
        %v387 = vld [vmem:[%s379 + $0x8] sm:$0xff]
        %v390 = vcombine.high %v384, %v384
        %v391 = vcombine.high %v385, %v385
        %394 = vrot.lane.b32.xlu0 %v384, 1
        %v395 = vpop.permute.xlu0 %394
        %396 = vrot.lane.b32.xlu0 %v390, 1
        %v397 = vpop.permute.xlu0 %396
        %398 = vrot.lane.b32.xlu0 %v385, 1
        %v399 = vpop.permute.xlu0 %398
        %400 = vrot.lane.b32.xlu0 %v391, 1
        %v401 = vpop.permute.xlu0 %400
        %v402 = vlaneseq
        %v403 = vand.u32 %v402, 127
        %vm404 = vcmp.lt.s32.totalorder %v403, 1
        %v405 = vsel %vm404, %v399, %v401
        %v406 = vsel %vm404, %v397, %v399
        %v407 = vsel %vm404, %v395, %v397
        %v408 = vsel %vm404, %v401, %v395
        %v410 = vlaneseq
        %v411 = vshrl.u32 %v410, 7
        %v412 = vsub.s32 0, %v411
        %v413 = vrot.slane %v382, %v412
        %v414 = vlaneseq
        %v415 = vshrl.u32 %v414, 7
        %v416 = vsub.s32 1, %v415
        %v417 = vrot.slane %v382, %v416
        %v418 = vlaneseq
        %v419 = vshrl.u32 %v418, 7
        %v420 = vsub.s32 2, %v419
        %v421 = vrot.slane %v382, %v420
        %v422 = vlaneseq
        %v423 = vshrl.u32 %v422, 7
        %v424 = vsub.s32 3, %v423
        %v425 = vrot.slane %v382, %v424
        %v430 = vmul.f32 %v413, %v408
        %v431 = vmul.f32 %v417, %v407
        %v432 = vmul.f32 %v421, %v406
        %v433 = vmul.f32 %v425, %v405
        %434 = vrot.lane.b32.xlu0 %v384, 127
        %v435 = vpop.permute.xlu0 %434
        %436 = vrot.lane.b32.xlu0 %v390, 127
        %v437 = vpop.permute.xlu0 %436
        %438 = vrot.lane.b32.xlu0 %v385, 127
        %v439 = vpop.permute.xlu0 %438
        %440 = vrot.lane.b32.xlu0 %v391, 127
        %v441 = vpop.permute.xlu0 %440
        %vm442 = vcmp.lt.s32.totalorder %v403, 127
        %v443 = vsel %vm442, %v439, %v441
        %v444 = vsel %vm442, %v437, %v439
        %v445 = vsel %vm442, %v435, %v437
        %v446 = vsel %vm442, %v441, %v435
        %v448 = vlaneseq
        %v449 = vshrl.u32 %v448, 7
        %v450 = vsub.s32 0, %v449
        %v451 = vrot.slane %v383, %v450
        %v452 = vlaneseq
        %v453 = vshrl.u32 %v452, 7
        %v454 = vsub.s32 1, %v453
        %v455 = vrot.slane %v383, %v454
        %v456 = vlaneseq
        %v457 = vshrl.u32 %v456, 7
        %v458 = vsub.s32 2, %v457
        %v459 = vrot.slane %v383, %v458
        %v460 = vlaneseq
        %v461 = vshrl.u32 %v460, 7
        %v462 = vsub.s32 3, %v461
        %v463 = vrot.slane %v383, %v462
        %v468 = vmul.f32 %v451, %v445
        %v469 = vmul.f32 %v455, %v444
        %v470 = vmul.f32 %v459, %v443
        %v471 = vmul.f32 %v463, %v446
        %v472 = vld [vmem:[%s4] sm:$0xff]
        %s473 = scalar_lea.vmem %s4, 8
        %v474 = vld [vmem:[%s473] sm:$0xff]
        %vm475 = vcmask 31744
        %v477 = vsel %vm475, %v474, 0
        %vm479 = vcmask 1043456
        %v480 = vsel %vm479, %v384, 0
        %v482 = vsel %vm479, %v390, 0
        %v484 = vsel %vm479, %v385, 0
        %v486 = vsel %vm479, %v391, 0
        %488 = vmatprep.subr.mxu0 %v482
        %489 = vmatpush1.msra.mxu0 %v480
        %490 = vmatprep.subr.mxu0 0.0
        %491 = vmatpush1.msra.mxu0 0.0
        %492 = vmatprep.subr.mxu0 0.0
        %493 = vmatpush1.msra.mxu0 0.0
        %494 = vmatprep.subr.mxu0 0.0
        %495 = vmatpush1.msra.mxu0 0.0
        %496 = vmatprep.subr.mxu0 0.0
        %497 = vmatpush1.msra.mxu0 0.0
        %498 = vmatprep.subr.mxu0 0.0
        %499 = vmatpush1.msra.mxu0 0.0
        %500 = vmatprep.subr.mxu0 0.0
        %501 = vmatpush1.msra.mxu0 0.0
        %502 = vmatprep.subr.mxu0 0.0
        %503 = vmatpush1.msra.mxu0 0.0
        %504 = vmatprep.subr.mxu0 0.0
        %505 = vmatpush1.msra.mxu0 0.0
        %506 = vmatprep.subr.mxu0 0.0
        %507 = vmatpush1.msra.mxu0 0.0
        %508 = vmatprep.subr.mxu0 0.0
        %509 = vmatpush1.msra.mxu0 0.0
        %510 = vmatprep.subr.mxu0 0.0
        %511 = vmatpush1.msra.mxu0 0.0
        %512 = vmatprep.subr.mxu0 0.0
        %513 = vmatpush1.msra.mxu0 0.0
        %514 = vmatprep.subr.mxu0 0.0
        %515 = vmatpush1.msra.mxu0 0.0
        %516 = vmatprep.subr.mxu0 0.0
        %517 = vmatpush1.msra.mxu0 0.0
        %518 = vmatprep.subr.mxu0 0.0
        %519 = vmatpush1.msra.mxu0 0.0
        %520 = vmatprep.subr.mxu0 0.0
        %521 = vmatpush1.msra.mxu0 0.0
        %522 = vmatprep.subr.mxu0 0.0
        %523 = vmatpush1.msra.mxu0 0.0
        %524 = vmatprep.subr.mxu0 0.0
        %525 = vmatpush1.msra.mxu0 0.0
        %526 = vmatprep.subr.mxu0 0.0
        %527 = vmatpush1.msra.mxu0 0.0
        %528 = vmatprep.subr.mxu0 0.0
        %529 = vmatpush1.msra.mxu0 0.0
        %530 = vmatprep.subr.mxu0 0.0
        %531 = vmatpush1.msra.mxu0 0.0
        %532 = vmatprep.subr.mxu0 0.0
        %533 = vmatpush1.msra.mxu0 0.0
        %534 = vmatprep.subr.mxu0 0.0
        %535 = vmatpush1.msra.mxu0 0.0
        %536 = vmatprep.subr.mxu0 0.0
        %537 = vmatpush1.msra.mxu0 0.0
        %538 = vmatprep.subr.mxu0 0.0
        %539 = vmatpush1.msra.mxu0 0.0
        %540 = vmatprep.subr.mxu0 0.0
        %541 = vmatpush1.msra.mxu0 0.0
        %542 = vmatprep.subr.mxu0 0.0
        %543 = vmatpush1.msra.mxu0 0.0
        %544 = vmatprep.subr.mxu0 0.0
        %545 = vmatpush1.msra.mxu0 0.0
        %546 = vmatprep.subr.mxu0 0.0
        %547 = vmatpush1.msra.mxu0 0.0
        %548 = vmatprep.subr.mxu0 0.0
        %549 = vmatpush1.msra.mxu0 0.0
        %550 = vmatprep.subr.mxu0 0.0
        %551 = vmatpush1.msra.mxu0 0.0
        %552 = vmatprep.mubr.f32.mxu0 0.0
        %553 = vmatmul.mubr.f32.gmra.mrb[0].mxu0 %v477
        %v554 = vpop.f32.mrb[0].mxu0
        %v555 = vadd.f32 0.0, %v554
        %v556 = vpop.f32.mrb[0].mxu0
        %v557 = vadd.f32 0.0, %v556
        %558 = vdwg.mxu0
        %559 = vmatprep.subr.mxu0 %v486
        %560 = vmatpush1.msra.mxu0 %v484
        %561 = vmatprep.subr.mxu0 0.0
        %562 = vmatpush1.msra.mxu0 0.0
        %563 = vmatprep.subr.mxu0 0.0
        %564 = vmatpush1.msra.mxu0 0.0
        %565 = vmatprep.subr.mxu0 0.0
        %566 = vmatpush1.msra.mxu0 0.0
        %567 = vmatprep.subr.mxu0 0.0
        %568 = vmatpush1.msra.mxu0 0.0
        %569 = vmatprep.subr.mxu0 0.0
        %570 = vmatpush1.msra.mxu0 0.0
        %571 = vmatprep.subr.mxu0 0.0
        %572 = vmatpush1.msra.mxu0 0.0
        %573 = vmatprep.subr.mxu0 0.0
        %574 = vmatpush1.msra.mxu0 0.0
        %575 = vmatprep.subr.mxu0 0.0
        %576 = vmatpush1.msra.mxu0 0.0
        %577 = vmatprep.subr.mxu0 0.0
        %578 = vmatpush1.msra.mxu0 0.0
        %579 = vmatprep.subr.mxu0 0.0
        %580 = vmatpush1.msra.mxu0 0.0
        %581 = vmatprep.subr.mxu0 0.0
        %582 = vmatpush1.msra.mxu0 0.0
        %583 = vmatprep.subr.mxu0 0.0
        %584 = vmatpush1.msra.mxu0 0.0
        %585 = vmatprep.subr.mxu0 0.0
        %586 = vmatpush1.msra.mxu0 0.0
        %587 = vmatprep.subr.mxu0 0.0
        %588 = vmatpush1.msra.mxu0 0.0
        %589 = vmatprep.subr.mxu0 0.0
        %590 = vmatpush1.msra.mxu0 0.0
        %591 = vmatprep.subr.mxu0 0.0
        %592 = vmatpush1.msra.mxu0 0.0
        %593 = vmatprep.subr.mxu0 0.0
        %594 = vmatpush1.msra.mxu0 0.0
        %595 = vmatprep.subr.mxu0 0.0
        %596 = vmatpush1.msra.mxu0 0.0
        %597 = vmatprep.subr.mxu0 0.0
        %598 = vmatpush1.msra.mxu0 0.0
        %599 = vmatprep.subr.mxu0 0.0
        %600 = vmatpush1.msra.mxu0 0.0
        %601 = vmatprep.subr.mxu0 0.0
        %602 = vmatpush1.msra.mxu0 0.0
        %603 = vmatprep.subr.mxu0 0.0
        %604 = vmatpush1.msra.mxu0 0.0
        %605 = vmatprep.subr.mxu0 0.0
        %606 = vmatpush1.msra.mxu0 0.0
        %607 = vmatprep.subr.mxu0 0.0
        %608 = vmatpush1.msra.mxu0 0.0
        %609 = vmatprep.subr.mxu0 0.0
        %610 = vmatpush1.msra.mxu0 0.0
        %611 = vmatprep.subr.mxu0 0.0
        %612 = vmatpush1.msra.mxu0 0.0
        %613 = vmatprep.subr.mxu0 0.0
        %614 = vmatpush1.msra.mxu0 0.0
        %615 = vmatprep.subr.mxu0 0.0
        %616 = vmatpush1.msra.mxu0 0.0
        %617 = vmatprep.subr.mxu0 0.0
        %618 = vmatpush1.msra.mxu0 0.0
        %619 = vmatprep.subr.mxu0 0.0
        %620 = vmatpush1.msra.mxu0 0.0
        %621 = vmatprep.subr.mxu0 0.0
        %622 = vmatpush1.msra.mxu0 0.0
        %623 = vmatprep.mubr.f32.mxu0 0.0
        %624 = vmatmul.mubr.f32.gmra.mrb[0].mxu0 %v477
        %v625 = vpop.f32.mrb[0].mxu0
        %v626 = vadd.f32 0.0, %v625
        %v627 = vpop.f32.mrb[0].mxu0
        %v628 = vadd.f32 0.0, %v627
        %629 = vdwg.mxu0
        %v631 = vsel %vm475, %v472, 0
        %v634 = vsel %vm479, %v430, 0
        %v637 = vsel %vm479, %v431, 0
        %v640 = vsel %vm479, %v432, 0
        %v643 = vsel %vm479, %v433, 0
        %645 = vmatprep.subr.mxu0 %v637
        %646 = vmatpush1.msra.mxu0 %v634
        %647 = vmatprep.subr.mxu0 0.0
        %648 = vmatpush1.msra.mxu0 0.0
        %649 = vmatprep.subr.mxu0 0.0
        %650 = vmatpush1.msra.mxu0 0.0
        %651 = vmatprep.subr.mxu0 0.0
        %652 = vmatpush1.msra.mxu0 0.0
        %653 = vmatprep.subr.mxu0 0.0
        %654 = vmatpush1.msra.mxu0 0.0
        %655 = vmatprep.subr.mxu0 0.0
        %656 = vmatpush1.msra.mxu0 0.0
        %657 = vmatprep.subr.mxu0 0.0
        %658 = vmatpush1.msra.mxu0 0.0
        %659 = vmatprep.subr.mxu0 0.0
        %660 = vmatpush1.msra.mxu0 0.0
        %661 = vmatprep.subr.mxu0 0.0
        %662 = vmatpush1.msra.mxu0 0.0
        %663 = vmatprep.subr.mxu0 0.0
        %664 = vmatpush1.msra.mxu0 0.0
        %665 = vmatprep.subr.mxu0 0.0
        %666 = vmatpush1.msra.mxu0 0.0
        %667 = vmatprep.subr.mxu0 0.0
        %668 = vmatpush1.msra.mxu0 0.0
        %669 = vmatprep.subr.mxu0 0.0
        %670 = vmatpush1.msra.mxu0 0.0
        %671 = vmatprep.subr.mxu0 0.0
        %672 = vmatpush1.msra.mxu0 0.0
        %673 = vmatprep.subr.mxu0 0.0
        %674 = vmatpush1.msra.mxu0 0.0
        %675 = vmatprep.subr.mxu0 0.0
        %676 = vmatpush1.msra.mxu0 0.0
        %677 = vmatprep.subr.mxu0 0.0
        %678 = vmatpush1.msra.mxu0 0.0
        %679 = vmatprep.subr.mxu0 0.0
        %680 = vmatpush1.msra.mxu0 0.0
        %681 = vmatprep.subr.mxu0 0.0
        %682 = vmatpush1.msra.mxu0 0.0
        %683 = vmatprep.subr.mxu0 0.0
        %684 = vmatpush1.msra.mxu0 0.0
        %685 = vmatprep.subr.mxu0 0.0
        %686 = vmatpush1.msra.mxu0 0.0
        %687 = vmatprep.subr.mxu0 0.0
        %688 = vmatpush1.msra.mxu0 0.0
        %689 = vmatprep.subr.mxu0 0.0
        %690 = vmatpush1.msra.mxu0 0.0
        %691 = vmatprep.subr.mxu0 0.0
        %692 = vmatpush1.msra.mxu0 0.0
        %693 = vmatprep.subr.mxu0 0.0
        %694 = vmatpush1.msra.mxu0 0.0
        %695 = vmatprep.subr.mxu0 0.0
        %696 = vmatpush1.msra.mxu0 0.0
        %697 = vmatprep.subr.mxu0 0.0
        %698 = vmatpush1.msra.mxu0 0.0
        %699 = vmatprep.subr.mxu0 0.0
        %700 = vmatpush1.msra.mxu0 0.0
        %701 = vmatprep.subr.mxu0 0.0
        %702 = vmatpush1.msra.mxu0 0.0
        %703 = vmatprep.subr.mxu0 0.0
        %704 = vmatpush1.msra.mxu0 0.0
        %705 = vmatprep.subr.mxu0 0.0
        %706 = vmatpush1.msra.mxu0 0.0
        %707 = vmatprep.subr.mxu0 0.0
        %708 = vmatpush1.msra.mxu0 0.0
        %709 = vmatprep.mubr.f32.mxu0 0.0
        %710 = vmatmul.mubr.f32.gmra.mrb[0].mxu0 %v631
        %v711 = vpop.f32.mrb[0].mxu0
        %v712 = vadd.f32 %v555, %v711
        %v713 = vpop.f32.mrb[0].mxu0
        %v714 = vadd.f32 %v557, %v713
        %715 = vdwg.mxu0
        %716 = vmatprep.subr.mxu0 %v643
        %717 = vmatpush1.msra.mxu0 %v640
        %718 = vmatprep.subr.mxu0 0.0
        %719 = vmatpush1.msra.mxu0 0.0
        %720 = vmatprep.subr.mxu0 0.0
        %721 = vmatpush1.msra.mxu0 0.0
        %722 = vmatprep.subr.mxu0 0.0
        %723 = vmatpush1.msra.mxu0 0.0
        %724 = vmatprep.subr.mxu0 0.0
        %725 = vmatpush1.msra.mxu0 0.0
        %726 = vmatprep.subr.mxu0 0.0
        %727 = vmatpush1.msra.mxu0 0.0
        %728 = vmatprep.subr.mxu0 0.0
        %729 = vmatpush1.msra.mxu0 0.0
        %730 = vmatprep.subr.mxu0 0.0
        %731 = vmatpush1.msra.mxu0 0.0
        %732 = vmatprep.subr.mxu0 0.0
        %733 = vmatpush1.msra.mxu0 0.0
        %734 = vmatprep.subr.mxu0 0.0
        %735 = vmatpush1.msra.mxu0 0.0
        %736 = vmatprep.subr.mxu0 0.0
        %737 = vmatpush1.msra.mxu0 0.0
        %738 = vmatprep.subr.mxu0 0.0
        %739 = vmatpush1.msra.mxu0 0.0
        %740 = vmatprep.subr.mxu0 0.0
        %741 = vmatpush1.msra.mxu0 0.0
        %742 = vmatprep.subr.mxu0 0.0
        %743 = vmatpush1.msra.mxu0 0.0
        %744 = vmatprep.subr.mxu0 0.0
        %745 = vmatpush1.msra.mxu0 0.0
        %746 = vmatprep.subr.mxu0 0.0
        %747 = vmatpush1.msra.mxu0 0.0
        %748 = vmatprep.subr.mxu0 0.0
        %749 = vmatpush1.msra.mxu0 0.0
        %750 = vmatprep.subr.mxu0 0.0
        %751 = vmatpush1.msra.mxu0 0.0
        %752 = vmatprep.subr.mxu0 0.0
        %753 = vmatpush1.msra.mxu0 0.0
        %754 = vmatprep.subr.mxu0 0.0
        %755 = vmatpush1.msra.mxu0 0.0
        %756 = vmatprep.subr.mxu0 0.0
        %757 = vmatpush1.msra.mxu0 0.0
        %758 = vmatprep.subr.mxu0 0.0
        %759 = vmatpush1.msra.mxu0 0.0
        %760 = vmatprep.subr.mxu0 0.0
        %761 = vmatpush1.msra.mxu0 0.0
        %762 = vmatprep.subr.mxu0 0.0
        %763 = vmatpush1.msra.mxu0 0.0
        %764 = vmatprep.subr.mxu0 0.0
        %765 = vmatpush1.msra.mxu0 0.0
        %766 = vmatprep.subr.mxu0 0.0
        %767 = vmatpush1.msra.mxu0 0.0
        %768 = vmatprep.subr.mxu0 0.0
        %769 = vmatpush1.msra.mxu0 0.0
        %770 = vmatprep.subr.mxu0 0.0
        %771 = vmatpush1.msra.mxu0 0.0
        %772 = vmatprep.subr.mxu0 0.0
        %773 = vmatpush1.msra.mxu0 0.0
        %774 = vmatprep.subr.mxu0 0.0
        %775 = vmatpush1.msra.mxu0 0.0
        %776 = vmatprep.subr.mxu0 0.0
        %777 = vmatpush1.msra.mxu0 0.0
        %778 = vmatprep.subr.mxu0 0.0
        %779 = vmatpush1.msra.mxu0 0.0
        %780 = vmatprep.mubr.f32.mxu0 0.0
        %781 = vmatmul.mubr.f32.gmra.mrb[0].mxu0 %v631
        %v782 = vpop.f32.mrb[0].mxu0
        %v783 = vadd.f32 %v626, %v782
        %v784 = vpop.f32.mrb[0].mxu0
        %v785 = vadd.f32 %v628, %v784
        %786 = vdwg.mxu0
        %s787 = scalar_lea.vmem %s4, 16
        %v788 = vld [vmem:[%s787] sm:$0xff]
        %v790 = vsel %vm475, %v788, 0
        %v793 = vsel %vm479, %v468, 0
        %v796 = vsel %vm479, %v469, 0
        %v799 = vsel %vm479, %v470, 0
        %v802 = vsel %vm479, %v471, 0
        %804 = vmatprep.subr.mxu0 %v796
        %805 = vmatpush1.msra.mxu0 %v793
        %806 = vmatprep.subr.mxu0 0.0
        %807 = vmatpush1.msra.mxu0 0.0
        %808 = vmatprep.subr.mxu0 0.0
        %809 = vmatpush1.msra.mxu0 0.0
        %810 = vmatprep.subr.mxu0 0.0
        %811 = vmatpush1.msra.mxu0 0.0
        %812 = vmatprep.subr.mxu0 0.0
        %813 = vmatpush1.msra.mxu0 0.0
        %814 = vmatprep.subr.mxu0 0.0
        %815 = vmatpush1.msra.mxu0 0.0
        %816 = vmatprep.subr.mxu0 0.0
        %817 = vmatpush1.msra.mxu0 0.0
        %818 = vmatprep.subr.mxu0 0.0
        %819 = vmatpush1.msra.mxu0 0.0
        %820 = vmatprep.subr.mxu0 0.0
        %821 = vmatpush1.msra.mxu0 0.0
        %822 = vmatprep.subr.mxu0 0.0
        %823 = vmatpush1.msra.mxu0 0.0
        %824 = vmatprep.subr.mxu0 0.0
        %825 = vmatpush1.msra.mxu0 0.0
        %826 = vmatprep.subr.mxu0 0.0
        %827 = vmatpush1.msra.mxu0 0.0
        %828 = vmatprep.subr.mxu0 0.0
        %829 = vmatpush1.msra.mxu0 0.0
        %830 = vmatprep.subr.mxu0 0.0
        %831 = vmatpush1.msra.mxu0 0.0
        %832 = vmatprep.subr.mxu0 0.0
        %833 = vmatpush1.msra.mxu0 0.0
        %834 = vmatprep.subr.mxu0 0.0
        %835 = vmatpush1.msra.mxu0 0.0
        %836 = vmatprep.subr.mxu0 0.0
        %837 = vmatpush1.msra.mxu0 0.0
        %838 = vmatprep.subr.mxu0 0.0
        %839 = vmatpush1.msra.mxu0 0.0
        %840 = vmatprep.subr.mxu0 0.0
        %841 = vmatpush1.msra.mxu0 0.0
        %842 = vmatprep.subr.mxu0 0.0
        %843 = vmatpush1.msra.mxu0 0.0
        %844 = vmatprep.subr.mxu0 0.0
        %845 = vmatpush1.msra.mxu0 0.0
        %846 = vmatprep.subr.mxu0 0.0
        %847 = vmatpush1.msra.mxu0 0.0
        %848 = vmatprep.subr.mxu0 0.0
        %849 = vmatpush1.msra.mxu0 0.0
        %850 = vmatprep.subr.mxu0 0.0
        %851 = vmatpush1.msra.mxu0 0.0
        %852 = vmatprep.subr.mxu0 0.0
        %853 = vmatpush1.msra.mxu0 0.0
        %854 = vmatprep.subr.mxu0 0.0
        %855 = vmatpush1.msra.mxu0 0.0
        %856 = vmatprep.subr.mxu0 0.0
        %857 = vmatpush1.msra.mxu0 0.0
        %858 = vmatprep.subr.mxu0 0.0
        %859 = vmatpush1.msra.mxu0 0.0
        %860 = vmatprep.subr.mxu0 0.0
        %861 = vmatpush1.msra.mxu0 0.0
        %862 = vmatprep.subr.mxu0 0.0
        %863 = vmatpush1.msra.mxu0 0.0
        %864 = vmatprep.subr.mxu0 0.0
        %865 = vmatpush1.msra.mxu0 0.0
        %866 = vmatprep.subr.mxu0 0.0
        %867 = vmatpush1.msra.mxu0 0.0
        %868 = vmatprep.mubr.f32.mxu0 0.0
        %869 = vmatmul.mubr.f32.gmra.mrb[0].mxu0 %v790
        %v870 = vpop.f32.mrb[0].mxu0
        %v871 = vadd.f32 0.0, %v870
        %v872 = vpop.f32.mrb[0].mxu0
        %v873 = vadd.f32 0.0, %v872
        %874 = vdwg.mxu0
        %875 = vmatprep.subr.mxu0 %v802
        %876 = vmatpush1.msra.mxu0 %v799
        %877 = vmatprep.subr.mxu0 0.0
        %878 = vmatpush1.msra.mxu0 0.0
        %879 = vmatprep.subr.mxu0 0.0
        %880 = vmatpush1.msra.mxu0 0.0
        %881 = vmatprep.subr.mxu0 0.0
        %882 = vmatpush1.msra.mxu0 0.0
        %883 = vmatprep.subr.mxu0 0.0
        %884 = vmatpush1.msra.mxu0 0.0
        %885 = vmatprep.subr.mxu0 0.0
        %886 = vmatpush1.msra.mxu0 0.0
        %887 = vmatprep.subr.mxu0 0.0
        %888 = vmatpush1.msra.mxu0 0.0
        %889 = vmatprep.subr.mxu0 0.0
        %890 = vmatpush1.msra.mxu0 0.0
        %891 = vmatprep.subr.mxu0 0.0
        %892 = vmatpush1.msra.mxu0 0.0
        %893 = vmatprep.subr.mxu0 0.0
        %894 = vmatpush1.msra.mxu0 0.0
        %895 = vmatprep.subr.mxu0 0.0
        %896 = vmatpush1.msra.mxu0 0.0
        %897 = vmatprep.subr.mxu0 0.0
        %898 = vmatpush1.msra.mxu0 0.0
        %899 = vmatprep.subr.mxu0 0.0
        %900 = vmatpush1.msra.mxu0 0.0
        %901 = vmatprep.subr.mxu0 0.0
        %902 = vmatpush1.msra.mxu0 0.0
        %903 = vmatprep.subr.mxu0 0.0
        %904 = vmatpush1.msra.mxu0 0.0
        %905 = vmatprep.subr.mxu0 0.0
        %906 = vmatpush1.msra.mxu0 0.0
        %907 = vmatprep.subr.mxu0 0.0
        %908 = vmatpush1.msra.mxu0 0.0
        %909 = vmatprep.subr.mxu0 0.0
        %910 = vmatpush1.msra.mxu0 0.0
        %911 = vmatprep.subr.mxu0 0.0
        %912 = vmatpush1.msra.mxu0 0.0
        %913 = vmatprep.subr.mxu0 0.0
        %914 = vmatpush1.msra.mxu0 0.0
        %915 = vmatprep.subr.mxu0 0.0
        %916 = vmatpush1.msra.mxu0 0.0
        %917 = vmatprep.subr.mxu0 0.0
        %918 = vmatpush1.msra.mxu0 0.0
        %919 = vmatprep.subr.mxu0 0.0
        %920 = vmatpush1.msra.mxu0 0.0
        %921 = vmatprep.subr.mxu0 0.0
        %922 = vmatpush1.msra.mxu0 0.0
        %923 = vmatprep.subr.mxu0 0.0
        %924 = vmatpush1.msra.mxu0 0.0
        %925 = vmatprep.subr.mxu0 0.0
        %926 = vmatpush1.msra.mxu0 0.0
        %927 = vmatprep.subr.mxu0 0.0
        %928 = vmatpush1.msra.mxu0 0.0
        %929 = vmatprep.subr.mxu0 0.0
        %930 = vmatpush1.msra.mxu0 0.0
        %931 = vmatprep.subr.mxu0 0.0
        %932 = vmatpush1.msra.mxu0 0.0
        %933 = vmatprep.subr.mxu0 0.0
        %934 = vmatpush1.msra.mxu0 0.0
        %935 = vmatprep.subr.mxu0 0.0
        %936 = vmatpush1.msra.mxu0 0.0
        %937 = vmatprep.subr.mxu0 0.0
        %938 = vmatpush1.msra.mxu0 0.0
        %939 = vmatprep.mubr.f32.mxu0 0.0
        %940 = vmatmul.mubr.f32.gmra.mrb[0].mxu0 %v790
        %v941 = vpop.f32.mrb[0].mxu0
        %v942 = vadd.f32 0.0, %v941
        %v943 = vpop.f32.mrb[0].mxu0
        %v944 = vadd.f32 0.0, %v943
        %945 = vdwg.mxu0
        %v946 = vadd.f32 %v712, %v871
        %v947 = vadd.f32 %v714, %v873
        %v948 = vadd.f32 %v783, %v942
        %v949 = vadd.f32 %v785, %v944
        %v952 = vcombine.high %v386, %v386
        %v953 = vcombine.high %v387, %v387
        %956 = vrot.lane.b32.xlu0 %v386, 1
        %v957 = vpop.permute.xlu0 %956
        %958 = vrot.lane.b32.xlu0 %v952, 1
        %v959 = vpop.permute.xlu0 %958
        %960 = vrot.lane.b32.xlu0 %v387, 1
        %v961 = vpop.permute.xlu0 %960
        %962 = vrot.lane.b32.xlu0 %v953, 1
        %v963 = vpop.permute.xlu0 %962
        %v964 = vsel %vm404, %v961, %v963
        %v965 = vsel %vm404, %v959, %v961
        %v966 = vsel %vm404, %v957, %v959
        %v967 = vsel %vm404, %v963, %v957
        %v968 = vmul.f32 %v413, %v967
        %v969 = vmul.f32 %v417, %v966
        %v970 = vmul.f32 %v421, %v965
        %v971 = vmul.f32 %v425, %v964
        %972 = vrot.lane.b32.xlu0 %v386, 127
        %v973 = vpop.permute.xlu0 %972
        %974 = vrot.lane.b32.xlu0 %v952, 127
        %v975 = vpop.permute.xlu0 %974
        %976 = vrot.lane.b32.xlu0 %v387, 127
        %v977 = vpop.permute.xlu0 %976
        %978 = vrot.lane.b32.xlu0 %v953, 127
        %v979 = vpop.permute.xlu0 %978
        %v980 = vsel %vm442, %v977, %v979
        %v981 = vsel %vm442, %v975, %v977
        %v982 = vsel %vm442, %v973, %v975
        %v983 = vsel %vm442, %v979, %v973
        %v984 = vmul.f32 %v451, %v982
        %v985 = vmul.f32 %v455, %v981
        %v986 = vmul.f32 %v459, %v980
        %v987 = vmul.f32 %v463, %v983
        %v988 = vld [vmem:[%s5] sm:$0xff]
        %s989 = scalar_lea.vmem %s5, 8
        %v990 = vld [vmem:[%s989] sm:$0xff]
        %v992 = vsel %vm475, %v990, 0
        %v994 = vsel %vm479, %v386, 0
        %v996 = vsel %vm479, %v952, 0
        %v998 = vsel %vm479, %v387, 0
        %v1000 = vsel %vm479, %v953, 0
        %1002 = vmatprep.subr.mxu0 %v996
        %1003 = vmatpush1.msra.mxu0 %v994
        %1004 = vmatprep.subr.mxu0 0.0
        %1005 = vmatpush1.msra.mxu0 0.0
        %1006 = vmatprep.subr.mxu0 0.0
        %1007 = vmatpush1.msra.mxu0 0.0
        %1008 = vmatprep.subr.mxu0 0.0
        %1009 = vmatpush1.msra.mxu0 0.0
        %1010 = vmatprep.subr.mxu0 0.0
        %1011 = vmatpush1.msra.mxu0 0.0
        %1012 = vmatprep.subr.mxu0 0.0
        %1013 = vmatpush1.msra.mxu0 0.0
        %1014 = vmatprep.subr.mxu0 0.0
        %1015 = vmatpush1.msra.mxu0 0.0
        %1016 = vmatprep.subr.mxu0 0.0
        %1017 = vmatpush1.msra.mxu0 0.0
        %1018 = vmatprep.subr.mxu0 0.0
        %1019 = vmatpush1.msra.mxu0 0.0
        %1020 = vmatprep.subr.mxu0 0.0
        %1021 = vmatpush1.msra.mxu0 0.0
        %1022 = vmatprep.subr.mxu0 0.0
        %1023 = vmatpush1.msra.mxu0 0.0
        %1024 = vmatprep.subr.mxu0 0.0
        %1025 = vmatpush1.msra.mxu0 0.0
        %1026 = vmatprep.subr.mxu0 0.0
        %1027 = vmatpush1.msra.mxu0 0.0
        %1028 = vmatprep.subr.mxu0 0.0
        %1029 = vmatpush1.msra.mxu0 0.0
        %1030 = vmatprep.subr.mxu0 0.0
        %1031 = vmatpush1.msra.mxu0 0.0
        %1032 = vmatprep.subr.mxu0 0.0
        %1033 = vmatpush1.msra.mxu0 0.0
        %1034 = vmatprep.subr.mxu0 0.0
        %1035 = vmatpush1.msra.mxu0 0.0
        %1036 = vmatprep.subr.mxu0 0.0
        %1037 = vmatpush1.msra.mxu0 0.0
        %1038 = vmatprep.subr.mxu0 0.0
        %1039 = vmatpush1.msra.mxu0 0.0
        %1040 = vmatprep.subr.mxu0 0.0
        %1041 = vmatpush1.msra.mxu0 0.0
        %1042 = vmatprep.subr.mxu0 0.0
        %1043 = vmatpush1.msra.mxu0 0.0
        %1044 = vmatprep.subr.mxu0 0.0
        %1045 = vmatpush1.msra.mxu0 0.0
        %1046 = vmatprep.subr.mxu0 0.0
        %1047 = vmatpush1.msra.mxu0 0.0
        %1048 = vmatprep.subr.mxu0 0.0
        %1049 = vmatpush1.msra.mxu0 0.0
        %1050 = vmatprep.subr.mxu0 0.0
        %1051 = vmatpush1.msra.mxu0 0.0
        %1052 = vmatprep.subr.mxu0 0.0
        %1053 = vmatpush1.msra.mxu0 0.0
        %1054 = vmatprep.subr.mxu0 0.0
        %1055 = vmatpush1.msra.mxu0 0.0
        %1056 = vmatprep.subr.mxu0 0.0
        %1057 = vmatpush1.msra.mxu0 0.0
        %1058 = vmatprep.subr.mxu0 0.0
        %1059 = vmatpush1.msra.mxu0 0.0
        %1060 = vmatprep.subr.mxu0 0.0
        %1061 = vmatpush1.msra.mxu0 0.0
        %1062 = vmatprep.subr.mxu0 0.0
        %1063 = vmatpush1.msra.mxu0 0.0
        %1064 = vmatprep.subr.mxu0 0.0
        %1065 = vmatpush1.msra.mxu0 0.0
        %1066 = vmatprep.mubr.f32.mxu0 0.0
        %1067 = vmatmul.mubr.f32.gmra.mrb[0].mxu0 %v992
        %v1068 = vpop.f32.mrb[0].mxu0
        %v1069 = vadd.f32 0.0, %v1068
        %v1070 = vpop.f32.mrb[0].mxu0
        %v1071 = vadd.f32 0.0, %v1070
        %1072 = vdwg.mxu0
        %1073 = vmatprep.subr.mxu0 %v1000
        %1074 = vmatpush1.msra.mxu0 %v998
        %1075 = vmatprep.subr.mxu0 0.0
        %1076 = vmatpush1.msra.mxu0 0.0
        %1077 = vmatprep.subr.mxu0 0.0
        %1078 = vmatpush1.msra.mxu0 0.0
        %1079 = vmatprep.subr.mxu0 0.0
        %1080 = vmatpush1.msra.mxu0 0.0
        %1081 = vmatprep.subr.mxu0 0.0
        %1082 = vmatpush1.msra.mxu0 0.0
        %1083 = vmatprep.subr.mxu0 0.0
        %1084 = vmatpush1.msra.mxu0 0.0
        %1085 = vmatprep.subr.mxu0 0.0
        %1086 = vmatpush1.msra.mxu0 0.0
        %1087 = vmatprep.subr.mxu0 0.0
        %1088 = vmatpush1.msra.mxu0 0.0
        %1089 = vmatprep.subr.mxu0 0.0
        %1090 = vmatpush1.msra.mxu0 0.0
        %1091 = vmatprep.subr.mxu0 0.0
        %1092 = vmatpush1.msra.mxu0 0.0
        %1093 = vmatprep.subr.mxu0 0.0
        %1094 = vmatpush1.msra.mxu0 0.0
        %1095 = vmatprep.subr.mxu0 0.0
        %1096 = vmatpush1.msra.mxu0 0.0
        %1097 = vmatprep.subr.mxu0 0.0
        %1098 = vmatpush1.msra.mxu0 0.0
        %1099 = vmatprep.subr.mxu0 0.0
        %1100 = vmatpush1.msra.mxu0 0.0
        %1101 = vmatprep.subr.mxu0 0.0
        %1102 = vmatpush1.msra.mxu0 0.0
        %1103 = vmatprep.subr.mxu0 0.0
        %1104 = vmatpush1.msra.mxu0 0.0
        %1105 = vmatprep.subr.mxu0 0.0
        %1106 = vmatpush1.msra.mxu0 0.0
        %1107 = vmatprep.subr.mxu0 0.0
        %1108 = vmatpush1.msra.mxu0 0.0
        %1109 = vmatprep.subr.mxu0 0.0
        %1110 = vmatpush1.msra.mxu0 0.0
        %1111 = vmatprep.subr.mxu0 0.0
        %1112 = vmatpush1.msra.mxu0 0.0
        %1113 = vmatprep.subr.mxu0 0.0
        %1114 = vmatpush1.msra.mxu0 0.0
        %1115 = vmatprep.subr.mxu0 0.0
        %1116 = vmatpush1.msra.mxu0 0.0
        %1117 = vmatprep.subr.mxu0 0.0
        %1118 = vmatpush1.msra.mxu0 0.0
        %1119 = vmatprep.subr.mxu0 0.0
        %1120 = vmatpush1.msra.mxu0 0.0
        %1121 = vmatprep.subr.mxu0 0.0
        %1122 = vmatpush1.msra.mxu0 0.0
        %1123 = vmatprep.subr.mxu0 0.0
        %1124 = vmatpush1.msra.mxu0 0.0
        %1125 = vmatprep.subr.mxu0 0.0
        %1126 = vmatpush1.msra.mxu0 0.0
        %1127 = vmatprep.subr.mxu0 0.0
        %1128 = vmatpush1.msra.mxu0 0.0
        %1129 = vmatprep.subr.mxu0 0.0
        %1130 = vmatpush1.msra.mxu0 0.0
        %1131 = vmatprep.subr.mxu0 0.0
        %1132 = vmatpush1.msra.mxu0 0.0
        %1133 = vmatprep.subr.mxu0 0.0
        %1134 = vmatpush1.msra.mxu0 0.0
        %1135 = vmatprep.subr.mxu0 0.0
        %1136 = vmatpush1.msra.mxu0 0.0
        %1137 = vmatprep.mubr.f32.mxu0 0.0
        %1138 = vmatmul.mubr.f32.gmra.mrb[0].mxu0 %v992
        %v1139 = vpop.f32.mrb[0].mxu0
        %v1140 = vadd.f32 0.0, %v1139
        %v1141 = vpop.f32.mrb[0].mxu0
        %v1142 = vadd.f32 0.0, %v1141
        %1143 = vdwg.mxu0
        %v1145 = vsel %vm475, %v988, 0
        %v1148 = vsel %vm479, %v968, 0
        %v1151 = vsel %vm479, %v969, 0
        %v1154 = vsel %vm479, %v970, 0
        %v1157 = vsel %vm479, %v971, 0
        %1159 = vmatprep.subr.mxu0 %v1151
        %1160 = vmatpush1.msra.mxu0 %v1148
        %1161 = vmatprep.subr.mxu0 0.0
        %1162 = vmatpush1.msra.mxu0 0.0
        %1163 = vmatprep.subr.mxu0 0.0
        %1164 = vmatpush1.msra.mxu0 0.0
        %1165 = vmatprep.subr.mxu0 0.0
        %1166 = vmatpush1.msra.mxu0 0.0
        %1167 = vmatprep.subr.mxu0 0.0
        %1168 = vmatpush1.msra.mxu0 0.0
        %1169 = vmatprep.subr.mxu0 0.0
        %1170 = vmatpush1.msra.mxu0 0.0
        %1171 = vmatprep.subr.mxu0 0.0
        %1172 = vmatpush1.msra.mxu0 0.0
        %1173 = vmatprep.subr.mxu0 0.0
        %1174 = vmatpush1.msra.mxu0 0.0
        %1175 = vmatprep.subr.mxu0 0.0
        %1176 = vmatpush1.msra.mxu0 0.0
        %1177 = vmatprep.subr.mxu0 0.0
        %1178 = vmatpush1.msra.mxu0 0.0
        %1179 = vmatprep.subr.mxu0 0.0
        %1180 = vmatpush1.msra.mxu0 0.0
        %1181 = vmatprep.subr.mxu0 0.0
        %1182 = vmatpush1.msra.mxu0 0.0
        %1183 = vmatprep.subr.mxu0 0.0
        %1184 = vmatpush1.msra.mxu0 0.0
        %1185 = vmatprep.subr.mxu0 0.0
        %1186 = vmatpush1.msra.mxu0 0.0
        %1187 = vmatprep.subr.mxu0 0.0
        %1188 = vmatpush1.msra.mxu0 0.0
        %1189 = vmatprep.subr.mxu0 0.0
        %1190 = vmatpush1.msra.mxu0 0.0
        %1191 = vmatprep.subr.mxu0 0.0
        %1192 = vmatpush1.msra.mxu0 0.0
        %1193 = vmatprep.subr.mxu0 0.0
        %1194 = vmatpush1.msra.mxu0 0.0
        %1195 = vmatprep.subr.mxu0 0.0
        %1196 = vmatpush1.msra.mxu0 0.0
        %1197 = vmatprep.subr.mxu0 0.0
        %1198 = vmatpush1.msra.mxu0 0.0
        %1199 = vmatprep.subr.mxu0 0.0
        %1200 = vmatpush1.msra.mxu0 0.0
        %1201 = vmatprep.subr.mxu0 0.0
        %1202 = vmatpush1.msra.mxu0 0.0
        %1203 = vmatprep.subr.mxu0 0.0
        %1204 = vmatpush1.msra.mxu0 0.0
        %1205 = vmatprep.subr.mxu0 0.0
        %1206 = vmatpush1.msra.mxu0 0.0
        %1207 = vmatprep.subr.mxu0 0.0
        %1208 = vmatpush1.msra.mxu0 0.0
        %1209 = vmatprep.subr.mxu0 0.0
        %1210 = vmatpush1.msra.mxu0 0.0
        %1211 = vmatprep.subr.mxu0 0.0
        %1212 = vmatpush1.msra.mxu0 0.0
        %1213 = vmatprep.subr.mxu0 0.0
        %1214 = vmatpush1.msra.mxu0 0.0
        %1215 = vmatprep.subr.mxu0 0.0
        %1216 = vmatpush1.msra.mxu0 0.0
        %1217 = vmatprep.subr.mxu0 0.0
        %1218 = vmatpush1.msra.mxu0 0.0
        %1219 = vmatprep.subr.mxu0 0.0
        %1220 = vmatpush1.msra.mxu0 0.0
        %1221 = vmatprep.subr.mxu0 0.0
        %1222 = vmatpush1.msra.mxu0 0.0
        %1223 = vmatprep.mubr.f32.mxu0 0.0
        %1224 = vmatmul.mubr.f32.gmra.mrb[0].mxu0 %v1145
        %v1225 = vpop.f32.mrb[0].mxu0
        %v1226 = vadd.f32 %v1069, %v1225
        %v1227 = vpop.f32.mrb[0].mxu0
        %v1228 = vadd.f32 %v1071, %v1227
        %1229 = vdwg.mxu0
        %1230 = vmatprep.subr.mxu0 %v1157
        %1231 = vmatpush1.msra.mxu0 %v1154
        %1232 = vmatprep.subr.mxu0 0.0
        %1233 = vmatpush1.msra.mxu0 0.0
        %1234 = vmatprep.subr.mxu0 0.0
        %1235 = vmatpush1.msra.mxu0 0.0
        %1236 = vmatprep.subr.mxu0 0.0
        %1237 = vmatpush1.msra.mxu0 0.0
        %1238 = vmatprep.subr.mxu0 0.0
        %1239 = vmatpush1.msra.mxu0 0.0
        %1240 = vmatprep.subr.mxu0 0.0
        %1241 = vmatpush1.msra.mxu0 0.0
        %1242 = vmatprep.subr.mxu0 0.0
        %1243 = vmatpush1.msra.mxu0 0.0
        %1244 = vmatprep.subr.mxu0 0.0
        %1245 = vmatpush1.msra.mxu0 0.0
        %1246 = vmatprep.subr.mxu0 0.0
        %1247 = vmatpush1.msra.mxu0 0.0
        %1248 = vmatprep.subr.mxu0 0.0
        %1249 = vmatpush1.msra.mxu0 0.0
        %1250 = vmatprep.subr.mxu0 0.0
        %1251 = vmatpush1.msra.mxu0 0.0
        %1252 = vmatprep.subr.mxu0 0.0
        %1253 = vmatpush1.msra.mxu0 0.0
        %1254 = vmatprep.subr.mxu0 0.0
        %1255 = vmatpush1.msra.mxu0 0.0
        %1256 = vmatprep.subr.mxu0 0.0
        %1257 = vmatpush1.msra.mxu0 0.0
        %1258 = vmatprep.subr.mxu0 0.0
        %1259 = vmatpush1.msra.mxu0 0.0
        %1260 = vmatprep.subr.mxu0 0.0
        %1261 = vmatpush1.msra.mxu0 0.0
        %1262 = vmatprep.subr.mxu0 0.0
        %1263 = vmatpush1.msra.mxu0 0.0
        %1264 = vmatprep.subr.mxu0 0.0
        %1265 = vmatpush1.msra.mxu0 0.0
        %1266 = vmatprep.subr.mxu0 0.0
        %1267 = vmatpush1.msra.mxu0 0.0
        %1268 = vmatprep.subr.mxu0 0.0
        %1269 = vmatpush1.msra.mxu0 0.0
        %1270 = vmatprep.subr.mxu0 0.0
        %1271 = vmatpush1.msra.mxu0 0.0
        %1272 = vmatprep.subr.mxu0 0.0
        %1273 = vmatpush1.msra.mxu0 0.0
        %1274 = vmatprep.subr.mxu0 0.0
        %1275 = vmatpush1.msra.mxu0 0.0
        %1276 = vmatprep.subr.mxu0 0.0
        %1277 = vmatpush1.msra.mxu0 0.0
        %1278 = vmatprep.subr.mxu0 0.0
        %1279 = vmatpush1.msra.mxu0 0.0
        %1280 = vmatprep.subr.mxu0 0.0
        %1281 = vmatpush1.msra.mxu0 0.0
        %1282 = vmatprep.subr.mxu0 0.0
        %1283 = vmatpush1.msra.mxu0 0.0
        %1284 = vmatprep.subr.mxu0 0.0
        %1285 = vmatpush1.msra.mxu0 0.0
        %1286 = vmatprep.subr.mxu0 0.0
        %1287 = vmatpush1.msra.mxu0 0.0
        %1288 = vmatprep.subr.mxu0 0.0
        %1289 = vmatpush1.msra.mxu0 0.0
        %1290 = vmatprep.subr.mxu0 0.0
        %1291 = vmatpush1.msra.mxu0 0.0
        %1292 = vmatprep.subr.mxu0 0.0
        %1293 = vmatpush1.msra.mxu0 0.0
        %1294 = vmatprep.mubr.f32.mxu0 0.0
        %1295 = vmatmul.mubr.f32.gmra.mrb[0].mxu0 %v1145
        %v1296 = vpop.f32.mrb[0].mxu0
        %v1297 = vadd.f32 %v1140, %v1296
        %v1298 = vpop.f32.mrb[0].mxu0
        %v1299 = vadd.f32 %v1142, %v1298
        %1300 = vdwg.mxu0
        %s1301 = scalar_lea.vmem %s5, 16
        %v1302 = vld [vmem:[%s1301] sm:$0xff]
        %v1304 = vsel %vm475, %v1302, 0
        %v1307 = vsel %vm479, %v984, 0
        %v1310 = vsel %vm479, %v985, 0
        %v1313 = vsel %vm479, %v986, 0
        %v1316 = vsel %vm479, %v987, 0
        %1318 = vmatprep.subr.mxu0 %v1310
        %1319 = vmatpush1.msra.mxu0 %v1307
        %1320 = vmatprep.subr.mxu0 0.0
        %1321 = vmatpush1.msra.mxu0 0.0
        %1322 = vmatprep.subr.mxu0 0.0
        %1323 = vmatpush1.msra.mxu0 0.0
        %1324 = vmatprep.subr.mxu0 0.0
        %1325 = vmatpush1.msra.mxu0 0.0
        %1326 = vmatprep.subr.mxu0 0.0
        %1327 = vmatpush1.msra.mxu0 0.0
        %1328 = vmatprep.subr.mxu0 0.0
        %1329 = vmatpush1.msra.mxu0 0.0
        %1330 = vmatprep.subr.mxu0 0.0
        %1331 = vmatpush1.msra.mxu0 0.0
        %1332 = vmatprep.subr.mxu0 0.0
        %1333 = vmatpush1.msra.mxu0 0.0
        %1334 = vmatprep.subr.mxu0 0.0
        %1335 = vmatpush1.msra.mxu0 0.0
        %1336 = vmatprep.subr.mxu0 0.0
        %1337 = vmatpush1.msra.mxu0 0.0
        %1338 = vmatprep.subr.mxu0 0.0
        %1339 = vmatpush1.msra.mxu0 0.0
        %1340 = vmatprep.subr.mxu0 0.0
        %1341 = vmatpush1.msra.mxu0 0.0
        %1342 = vmatprep.subr.mxu0 0.0
        %1343 = vmatpush1.msra.mxu0 0.0
        %1344 = vmatprep.subr.mxu0 0.0
        %1345 = vmatpush1.msra.mxu0 0.0
        %1346 = vmatprep.subr.mxu0 0.0
        %1347 = vmatpush1.msra.mxu0 0.0
        %1348 = vmatprep.subr.mxu0 0.0
        %1349 = vmatpush1.msra.mxu0 0.0
        %1350 = vmatprep.subr.mxu0 0.0
        %1351 = vmatpush1.msra.mxu0 0.0
        %1352 = vmatprep.subr.mxu0 0.0
        %1353 = vmatpush1.msra.mxu0 0.0
        %1354 = vmatprep.subr.mxu0 0.0
        %1355 = vmatpush1.msra.mxu0 0.0
        %1356 = vmatprep.subr.mxu0 0.0
        %1357 = vmatpush1.msra.mxu0 0.0
        %1358 = vmatprep.subr.mxu0 0.0
        %1359 = vmatpush1.msra.mxu0 0.0
        %1360 = vmatprep.subr.mxu0 0.0
        %1361 = vmatpush1.msra.mxu0 0.0
        %1362 = vmatprep.subr.mxu0 0.0
        %1363 = vmatpush1.msra.mxu0 0.0
        %1364 = vmatprep.subr.mxu0 0.0
        %1365 = vmatpush1.msra.mxu0 0.0
        %1366 = vmatprep.subr.mxu0 0.0
        %1367 = vmatpush1.msra.mxu0 0.0
        %1368 = vmatprep.subr.mxu0 0.0
        %1369 = vmatpush1.msra.mxu0 0.0
        %1370 = vmatprep.subr.mxu0 0.0
        %1371 = vmatpush1.msra.mxu0 0.0
        %1372 = vmatprep.subr.mxu0 0.0
        %1373 = vmatpush1.msra.mxu0 0.0
        %1374 = vmatprep.subr.mxu0 0.0
        %1375 = vmatpush1.msra.mxu0 0.0
        %1376 = vmatprep.subr.mxu0 0.0
        %1377 = vmatpush1.msra.mxu0 0.0
        %1378 = vmatprep.subr.mxu0 0.0
        %1379 = vmatpush1.msra.mxu0 0.0
        %1380 = vmatprep.subr.mxu0 0.0
        %1381 = vmatpush1.msra.mxu0 0.0
        %1382 = vmatprep.mubr.f32.mxu0 0.0
        %1383 = vmatmul.mubr.f32.gmra.mrb[0].mxu0 %v1304
        %v1384 = vpop.f32.mrb[0].mxu0
        %v1385 = vadd.f32 0.0, %v1384
        %v1386 = vpop.f32.mrb[0].mxu0
        %v1387 = vadd.f32 0.0, %v1386
        %1388 = vdwg.mxu0
        %1389 = vmatprep.subr.mxu0 %v1316
        %1390 = vmatpush1.msra.mxu0 %v1313
        %1391 = vmatprep.subr.mxu0 0.0
        %1392 = vmatpush1.msra.mxu0 0.0
        %1393 = vmatprep.subr.mxu0 0.0
        %1394 = vmatpush1.msra.mxu0 0.0
        %1395 = vmatprep.subr.mxu0 0.0
        %1396 = vmatpush1.msra.mxu0 0.0
        %1397 = vmatprep.subr.mxu0 0.0
        %1398 = vmatpush1.msra.mxu0 0.0
        %1399 = vmatprep.subr.mxu0 0.0
        %1400 = vmatpush1.msra.mxu0 0.0
        %1401 = vmatprep.subr.mxu0 0.0
        %1402 = vmatpush1.msra.mxu0 0.0
        %1403 = vmatprep.subr.mxu0 0.0
        %1404 = vmatpush1.msra.mxu0 0.0
        %1405 = vmatprep.subr.mxu0 0.0
        %1406 = vmatpush1.msra.mxu0 0.0
        %1407 = vmatprep.subr.mxu0 0.0
        %1408 = vmatpush1.msra.mxu0 0.0
        %1409 = vmatprep.subr.mxu0 0.0
        %1410 = vmatpush1.msra.mxu0 0.0
        %1411 = vmatprep.subr.mxu0 0.0
        %1412 = vmatpush1.msra.mxu0 0.0
        %1413 = vmatprep.subr.mxu0 0.0
        %1414 = vmatpush1.msra.mxu0 0.0
        %1415 = vmatprep.subr.mxu0 0.0
        %1416 = vmatpush1.msra.mxu0 0.0
        %1417 = vmatprep.subr.mxu0 0.0
        %1418 = vmatpush1.msra.mxu0 0.0
        %1419 = vmatprep.subr.mxu0 0.0
        %1420 = vmatpush1.msra.mxu0 0.0
        %1421 = vmatprep.subr.mxu0 0.0
        %1422 = vmatpush1.msra.mxu0 0.0
        %1423 = vmatprep.subr.mxu0 0.0
        %1424 = vmatpush1.msra.mxu0 0.0
        %1425 = vmatprep.subr.mxu0 0.0
        %1426 = vmatpush1.msra.mxu0 0.0
        %1427 = vmatprep.subr.mxu0 0.0
        %1428 = vmatpush1.msra.mxu0 0.0
        %1429 = vmatprep.subr.mxu0 0.0
        %1430 = vmatpush1.msra.mxu0 0.0
        %1431 = vmatprep.subr.mxu0 0.0
        %1432 = vmatpush1.msra.mxu0 0.0
        %1433 = vmatprep.subr.mxu0 0.0
        %1434 = vmatpush1.msra.mxu0 0.0
        %1435 = vmatprep.subr.mxu0 0.0
        %1436 = vmatpush1.msra.mxu0 0.0
        %1437 = vmatprep.subr.mxu0 0.0
        %1438 = vmatpush1.msra.mxu0 0.0
        %1439 = vmatprep.subr.mxu0 0.0
        %1440 = vmatpush1.msra.mxu0 0.0
        %1441 = vmatprep.subr.mxu0 0.0
        %1442 = vmatpush1.msra.mxu0 0.0
        %1443 = vmatprep.subr.mxu0 0.0
        %1444 = vmatpush1.msra.mxu0 0.0
        %1445 = vmatprep.subr.mxu0 0.0
        %1446 = vmatpush1.msra.mxu0 0.0
        %1447 = vmatprep.subr.mxu0 0.0
        %1448 = vmatpush1.msra.mxu0 0.0
        %1449 = vmatprep.subr.mxu0 0.0
        %1450 = vmatpush1.msra.mxu0 0.0
        %1451 = vmatprep.subr.mxu0 0.0
        %1452 = vmatpush1.msra.mxu0 0.0
        %1453 = vmatprep.mubr.f32.mxu0 0.0
        %1454 = vmatmul.mubr.f32.gmra.mrb[0].mxu0 %v1304
        %v1455 = vpop.f32.mrb[0].mxu0
        %v1456 = vadd.f32 0.0, %v1455
        %v1457 = vpop.f32.mrb[0].mxu0
        %v1458 = vadd.f32 0.0, %v1457
        %1459 = vdwg.mxu0
        %v1460 = vadd.f32 %v1226, %v1385
        %v1461 = vadd.f32 %v1228, %v1387
        %v1462 = vadd.f32 %v1297, %v1456
        %v1463 = vadd.f32 %v1299, %v1458
        %v1464 = vadd.f32 %v946, %v1460
        %v1465 = vadd.f32 %v947, %v1461
        %v1466 = vadd.f32 %v948, %v1462
        %v1467 = vadd.f32 %v949, %v1463
        %v1468 = vld [vmem:[%s6] sm:$0xff]
        %1470 = vset.pattern.permute.xlu0 0
        %1471 = vperm.xlu0 %1470, %v1468
        %v1472 = vpop.permute.xlu0 %1471
        %v1474 = vadd.f32 %v1464, %v1472
        %v1475 = vadd.f32 %v1465, %v1472
        %v1476 = vadd.f32 %v1466, %v1472
        %v1477 = vadd.f32 %v1467, %v1472
        %v1478 = vmax.f32 %v1474, 0.0
        %v1479 = vmax.f32 %v1475, 0.0
        %v1480 = vmax.f32 %v1476, 0.0
        %v1481 = vmax.f32 %v1477, 0.0
        %1482 = vrot.lane.b32.xlu0 %v1478, 1
        %v1483 = vpop.permute.xlu0 %1482
        %1484 = vrot.lane.b32.xlu0 %v1479, 1
        %v1485 = vpop.permute.xlu0 %1484
        %1486 = vrot.lane.b32.xlu0 %v1480, 1
        %v1487 = vpop.permute.xlu0 %1486
        %1488 = vrot.lane.b32.xlu0 %v1481, 1
        %v1489 = vpop.permute.xlu0 %1488
        %v1490 = vsel %vm404, %v1487, %v1489
        %v1491 = vsel %vm404, %v1485, %v1487
        %v1492 = vsel %vm404, %v1483, %v1485
        %v1493 = vsel %vm404, %v1489, %v1483
        %v1494 = vmul.f32 %v413, %v1493
        %v1495 = vmul.f32 %v417, %v1492
        %v1496 = vmul.f32 %v421, %v1491
        %v1497 = vmul.f32 %v425, %v1490
        %1498 = vrot.lane.b32.xlu0 %v1478, 127
        %v1499 = vpop.permute.xlu0 %1498
        %1500 = vrot.lane.b32.xlu0 %v1479, 127
        %v1501 = vpop.permute.xlu0 %1500
        %1502 = vrot.lane.b32.xlu0 %v1480, 127
        %v1503 = vpop.permute.xlu0 %1502
        %1504 = vrot.lane.b32.xlu0 %v1481, 127
        %v1505 = vpop.permute.xlu0 %1504
        %v1506 = vsel %vm442, %v1503, %v1505
        %v1507 = vsel %vm442, %v1501, %v1503
        %v1508 = vsel %vm442, %v1499, %v1501
        %v1509 = vsel %vm442, %v1505, %v1499
        %v1510 = vmul.f32 %v451, %v1508
        %v1511 = vmul.f32 %v455, %v1507
        %v1512 = vmul.f32 %v459, %v1506
        %v1513 = vmul.f32 %v463, %v1509
        %v1514 = vld [vmem:[%s7] sm:$0xff]
        %s1515 = scalar_lea.vmem %s7, 8
        %v1516 = vld [vmem:[%s1515] sm:$0xff]
        %vm1517 = vcmask 64512
        %v1519 = vsel %vm1517, %v1516, 0
        %1521 = vmatprep.subr.mxu0 %v1479
        %1522 = vmatpush1.msra.mxu0 %v1478
        %1523 = vmatprep.subr.mxu0 0.0
        %1524 = vmatpush1.msra.mxu0 0.0
        %1525 = vmatprep.subr.mxu0 0.0
        %1526 = vmatpush1.msra.mxu0 0.0
        %1527 = vmatprep.subr.mxu0 0.0
        %1528 = vmatpush1.msra.mxu0 0.0
        %1529 = vmatprep.subr.mxu0 0.0
        %1530 = vmatpush1.msra.mxu0 0.0
        %1531 = vmatprep.subr.mxu0 0.0
        %1532 = vmatpush1.msra.mxu0 0.0
        %1533 = vmatprep.subr.mxu0 0.0
        %1534 = vmatpush1.msra.mxu0 0.0
        %1535 = vmatprep.subr.mxu0 0.0
        %1536 = vmatpush1.msra.mxu0 0.0
        %1537 = vmatprep.subr.mxu0 0.0
        %1538 = vmatpush1.msra.mxu0 0.0
        %1539 = vmatprep.subr.mxu0 0.0
        %1540 = vmatpush1.msra.mxu0 0.0
        %1541 = vmatprep.subr.mxu0 0.0
        %1542 = vmatpush1.msra.mxu0 0.0
        %1543 = vmatprep.subr.mxu0 0.0
        %1544 = vmatpush1.msra.mxu0 0.0
        %1545 = vmatprep.subr.mxu0 0.0
        %1546 = vmatpush1.msra.mxu0 0.0
        %1547 = vmatprep.subr.mxu0 0.0
        %1548 = vmatpush1.msra.mxu0 0.0
        %1549 = vmatprep.subr.mxu0 0.0
        %1550 = vmatpush1.msra.mxu0 0.0
        %1551 = vmatprep.subr.mxu0 0.0
        %1552 = vmatpush1.msra.mxu0 0.0
        %1553 = vmatprep.subr.mxu0 0.0
        %1554 = vmatpush1.msra.mxu0 0.0
        %1555 = vmatprep.subr.mxu0 0.0
        %1556 = vmatpush1.msra.mxu0 0.0
        %1557 = vmatprep.subr.mxu0 0.0
        %1558 = vmatpush1.msra.mxu0 0.0
        %1559 = vmatprep.subr.mxu0 0.0
        %1560 = vmatpush1.msra.mxu0 0.0
        %1561 = vmatprep.subr.mxu0 0.0
        %1562 = vmatpush1.msra.mxu0 0.0
        %1563 = vmatprep.subr.mxu0 0.0
        %1564 = vmatpush1.msra.mxu0 0.0
        %1565 = vmatprep.subr.mxu0 0.0
        %1566 = vmatpush1.msra.mxu0 0.0
        %1567 = vmatprep.subr.mxu0 0.0
        %1568 = vmatpush1.msra.mxu0 0.0
        %1569 = vmatprep.subr.mxu0 0.0
        %1570 = vmatpush1.msra.mxu0 0.0
        %1571 = vmatprep.subr.mxu0 0.0
        %1572 = vmatpush1.msra.mxu0 0.0
        %1573 = vmatprep.subr.mxu0 0.0
        %1574 = vmatpush1.msra.mxu0 0.0
        %1575 = vmatprep.subr.mxu0 0.0
        %1576 = vmatpush1.msra.mxu0 0.0
        %1577 = vmatprep.subr.mxu0 0.0
        %1578 = vmatpush1.msra.mxu0 0.0
        %1579 = vmatprep.subr.mxu0 0.0
        %1580 = vmatpush1.msra.mxu0 0.0
        %1581 = vmatprep.subr.mxu0 0.0
        %1582 = vmatpush1.msra.mxu0 0.0
        %1583 = vmatprep.subr.mxu0 0.0
        %1584 = vmatpush1.msra.mxu0 0.0
        %1585 = vmatprep.mubr.f32.mxu0 0.0
        %1586 = vmatmul.mubr.f32.gmra.mrb[0].mxu0 %v1519
        %v1587 = vpop.f32.mrb[0].mxu0
        %v1588 = vadd.f32 0.0, %v1587
        %v1589 = vpop.f32.mrb[0].mxu0
        %v1590 = vadd.f32 0.0, %v1589
        %1591 = vdwg.mxu0
        %1592 = vmatprep.subr.mxu0 %v1481
        %1593 = vmatpush1.msra.mxu0 %v1480
        %1594 = vmatprep.subr.mxu0 0.0
        %1595 = vmatpush1.msra.mxu0 0.0
        %1596 = vmatprep.subr.mxu0 0.0
        %1597 = vmatpush1.msra.mxu0 0.0
        %1598 = vmatprep.subr.mxu0 0.0
        %1599 = vmatpush1.msra.mxu0 0.0
        %1600 = vmatprep.subr.mxu0 0.0
        %1601 = vmatpush1.msra.mxu0 0.0
        %1602 = vmatprep.subr.mxu0 0.0
        %1603 = vmatpush1.msra.mxu0 0.0
        %1604 = vmatprep.subr.mxu0 0.0
        %1605 = vmatpush1.msra.mxu0 0.0
        %1606 = vmatprep.subr.mxu0 0.0
        %1607 = vmatpush1.msra.mxu0 0.0
        %1608 = vmatprep.subr.mxu0 0.0
        %1609 = vmatpush1.msra.mxu0 0.0
        %1610 = vmatprep.subr.mxu0 0.0
        %1611 = vmatpush1.msra.mxu0 0.0
        %1612 = vmatprep.subr.mxu0 0.0
        %1613 = vmatpush1.msra.mxu0 0.0
        %1614 = vmatprep.subr.mxu0 0.0
        %1615 = vmatpush1.msra.mxu0 0.0
        %1616 = vmatprep.subr.mxu0 0.0
        %1617 = vmatpush1.msra.mxu0 0.0
        %1618 = vmatprep.subr.mxu0 0.0
        %1619 = vmatpush1.msra.mxu0 0.0
        %1620 = vmatprep.subr.mxu0 0.0
        %1621 = vmatpush1.msra.mxu0 0.0
        %1622 = vmatprep.subr.mxu0 0.0
        %1623 = vmatpush1.msra.mxu0 0.0
        %1624 = vmatprep.subr.mxu0 0.0
        %1625 = vmatpush1.msra.mxu0 0.0
        %1626 = vmatprep.subr.mxu0 0.0
        %1627 = vmatpush1.msra.mxu0 0.0
        %1628 = vmatprep.subr.mxu0 0.0
        %1629 = vmatpush1.msra.mxu0 0.0
        %1630 = vmatprep.subr.mxu0 0.0
        %1631 = vmatpush1.msra.mxu0 0.0
        %1632 = vmatprep.subr.mxu0 0.0
        %1633 = vmatpush1.msra.mxu0 0.0
        %1634 = vmatprep.subr.mxu0 0.0
        %1635 = vmatpush1.msra.mxu0 0.0
        %1636 = vmatprep.subr.mxu0 0.0
        %1637 = vmatpush1.msra.mxu0 0.0
        %1638 = vmatprep.subr.mxu0 0.0
        %1639 = vmatpush1.msra.mxu0 0.0
        %1640 = vmatprep.subr.mxu0 0.0
        %1641 = vmatpush1.msra.mxu0 0.0
        %1642 = vmatprep.subr.mxu0 0.0
        %1643 = vmatpush1.msra.mxu0 0.0
        %1644 = vmatprep.subr.mxu0 0.0
        %1645 = vmatpush1.msra.mxu0 0.0
        %1646 = vmatprep.subr.mxu0 0.0
        %1647 = vmatpush1.msra.mxu0 0.0
        %1648 = vmatprep.subr.mxu0 0.0
        %1649 = vmatpush1.msra.mxu0 0.0
        %1650 = vmatprep.subr.mxu0 0.0
        %1651 = vmatpush1.msra.mxu0 0.0
        %1652 = vmatprep.subr.mxu0 0.0
        %1653 = vmatpush1.msra.mxu0 0.0
        %1654 = vmatprep.subr.mxu0 0.0
        %1655 = vmatpush1.msra.mxu0 0.0
        %1656 = vmatprep.mubr.f32.mxu0 0.0
        %1657 = vmatmul.mubr.f32.gmra.mrb[0].mxu0 %v1519
        %v1658 = vpop.f32.mrb[0].mxu0
        %v1659 = vadd.f32 0.0, %v1658
        %v1660 = vpop.f32.mrb[0].mxu0
        %v1661 = vadd.f32 0.0, %v1660
        %1662 = vdwg.mxu0
        %v1664 = vsel %vm1517, %v1514, 0
        %1666 = vmatprep.subr.mxu0 %v1495
        %1667 = vmatpush1.msra.mxu0 %v1494
        %1668 = vmatprep.subr.mxu0 0.0
        %1669 = vmatpush1.msra.mxu0 0.0
        %1670 = vmatprep.subr.mxu0 0.0
        %1671 = vmatpush1.msra.mxu0 0.0
        %1672 = vmatprep.subr.mxu0 0.0
        %1673 = vmatpush1.msra.mxu0 0.0
        %1674 = vmatprep.subr.mxu0 0.0
        %1675 = vmatpush1.msra.mxu0 0.0
        %1676 = vmatprep.subr.mxu0 0.0
        %1677 = vmatpush1.msra.mxu0 0.0
        %1678 = vmatprep.subr.mxu0 0.0
        %1679 = vmatpush1.msra.mxu0 0.0
        %1680 = vmatprep.subr.mxu0 0.0
        %1681 = vmatpush1.msra.mxu0 0.0
        %1682 = vmatprep.subr.mxu0 0.0
        %1683 = vmatpush1.msra.mxu0 0.0
        %1684 = vmatprep.subr.mxu0 0.0
        %1685 = vmatpush1.msra.mxu0 0.0
        %1686 = vmatprep.subr.mxu0 0.0
        %1687 = vmatpush1.msra.mxu0 0.0
        %1688 = vmatprep.subr.mxu0 0.0
        %1689 = vmatpush1.msra.mxu0 0.0
        %1690 = vmatprep.subr.mxu0 0.0
        %1691 = vmatpush1.msra.mxu0 0.0
        %1692 = vmatprep.subr.mxu0 0.0
        %1693 = vmatpush1.msra.mxu0 0.0
        %1694 = vmatprep.subr.mxu0 0.0
        %1695 = vmatpush1.msra.mxu0 0.0
        %1696 = vmatprep.subr.mxu0 0.0
        %1697 = vmatpush1.msra.mxu0 0.0
        %1698 = vmatprep.subr.mxu0 0.0
        %1699 = vmatpush1.msra.mxu0 0.0
        %1700 = vmatprep.subr.mxu0 0.0
        %1701 = vmatpush1.msra.mxu0 0.0
        %1702 = vmatprep.subr.mxu0 0.0
        %1703 = vmatpush1.msra.mxu0 0.0
        %1704 = vmatprep.subr.mxu0 0.0
        %1705 = vmatpush1.msra.mxu0 0.0
        %1706 = vmatprep.subr.mxu0 0.0
        %1707 = vmatpush1.msra.mxu0 0.0
        %1708 = vmatprep.subr.mxu0 0.0
        %1709 = vmatpush1.msra.mxu0 0.0
        %1710 = vmatprep.subr.mxu0 0.0
        %1711 = vmatpush1.msra.mxu0 0.0
        %1712 = vmatprep.subr.mxu0 0.0
        %1713 = vmatpush1.msra.mxu0 0.0
        %1714 = vmatprep.subr.mxu0 0.0
        %1715 = vmatpush1.msra.mxu0 0.0
        %1716 = vmatprep.subr.mxu0 0.0
        %1717 = vmatpush1.msra.mxu0 0.0
        %1718 = vmatprep.subr.mxu0 0.0
        %1719 = vmatpush1.msra.mxu0 0.0
        %1720 = vmatprep.subr.mxu0 0.0
        %1721 = vmatpush1.msra.mxu0 0.0
        %1722 = vmatprep.subr.mxu0 0.0
        %1723 = vmatpush1.msra.mxu0 0.0
        %1724 = vmatprep.subr.mxu0 0.0
        %1725 = vmatpush1.msra.mxu0 0.0
        %1726 = vmatprep.subr.mxu0 0.0
        %1727 = vmatpush1.msra.mxu0 0.0
        %1728 = vmatprep.subr.mxu0 0.0
        %1729 = vmatpush1.msra.mxu0 0.0
        %1730 = vmatprep.mubr.f32.mxu0 0.0
        %1731 = vmatmul.mubr.f32.gmra.mrb[0].mxu0 %v1664
        %v1732 = vpop.f32.mrb[0].mxu0
        %v1733 = vadd.f32 %v1588, %v1732
        %v1734 = vpop.f32.mrb[0].mxu0
        %v1735 = vadd.f32 %v1590, %v1734
        %1736 = vdwg.mxu0
        %1737 = vmatprep.subr.mxu0 %v1497
        %1738 = vmatpush1.msra.mxu0 %v1496
        %1739 = vmatprep.subr.mxu0 0.0
        %1740 = vmatpush1.msra.mxu0 0.0
        %1741 = vmatprep.subr.mxu0 0.0
        %1742 = vmatpush1.msra.mxu0 0.0
        %1743 = vmatprep.subr.mxu0 0.0
        %1744 = vmatpush1.msra.mxu0 0.0
        %1745 = vmatprep.subr.mxu0 0.0
        %1746 = vmatpush1.msra.mxu0 0.0
        %1747 = vmatprep.subr.mxu0 0.0
        %1748 = vmatpush1.msra.mxu0 0.0
        %1749 = vmatprep.subr.mxu0 0.0
        %1750 = vmatpush1.msra.mxu0 0.0
        %1751 = vmatprep.subr.mxu0 0.0
        %1752 = vmatpush1.msra.mxu0 0.0
        %1753 = vmatprep.subr.mxu0 0.0
        %1754 = vmatpush1.msra.mxu0 0.0
        %1755 = vmatprep.subr.mxu0 0.0
        %1756 = vmatpush1.msra.mxu0 0.0
        %1757 = vmatprep.subr.mxu0 0.0
        %1758 = vmatpush1.msra.mxu0 0.0
        %1759 = vmatprep.subr.mxu0 0.0
        %1760 = vmatpush1.msra.mxu0 0.0
        %1761 = vmatprep.subr.mxu0 0.0
        %1762 = vmatpush1.msra.mxu0 0.0
        %1763 = vmatprep.subr.mxu0 0.0
        %1764 = vmatpush1.msra.mxu0 0.0
        %1765 = vmatprep.subr.mxu0 0.0
        %1766 = vmatpush1.msra.mxu0 0.0
        %1767 = vmatprep.subr.mxu0 0.0
        %1768 = vmatpush1.msra.mxu0 0.0
        %1769 = vmatprep.subr.mxu0 0.0
        %1770 = vmatpush1.msra.mxu0 0.0
        %1771 = vmatprep.subr.mxu0 0.0
        %1772 = vmatpush1.msra.mxu0 0.0
        %1773 = vmatprep.subr.mxu0 0.0
        %1774 = vmatpush1.msra.mxu0 0.0
        %1775 = vmatprep.subr.mxu0 0.0
        %1776 = vmatpush1.msra.mxu0 0.0
        %1777 = vmatprep.subr.mxu0 0.0
        %1778 = vmatpush1.msra.mxu0 0.0
        %1779 = vmatprep.subr.mxu0 0.0
        %1780 = vmatpush1.msra.mxu0 0.0
        %1781 = vmatprep.subr.mxu0 0.0
        %1782 = vmatpush1.msra.mxu0 0.0
        %1783 = vmatprep.subr.mxu0 0.0
        %1784 = vmatpush1.msra.mxu0 0.0
        %1785 = vmatprep.subr.mxu0 0.0
        %1786 = vmatpush1.msra.mxu0 0.0
        %1787 = vmatprep.subr.mxu0 0.0
        %1788 = vmatpush1.msra.mxu0 0.0
        %1789 = vmatprep.subr.mxu0 0.0
        %1790 = vmatpush1.msra.mxu0 0.0
        %1791 = vmatprep.subr.mxu0 0.0
        %1792 = vmatpush1.msra.mxu0 0.0
        %1793 = vmatprep.subr.mxu0 0.0
        %1794 = vmatpush1.msra.mxu0 0.0
        %1795 = vmatprep.subr.mxu0 0.0
        %1796 = vmatpush1.msra.mxu0 0.0
        %1797 = vmatprep.subr.mxu0 0.0
        %1798 = vmatpush1.msra.mxu0 0.0
        %1799 = vmatprep.subr.mxu0 0.0
        %1800 = vmatpush1.msra.mxu0 0.0
        %1801 = vmatprep.mubr.f32.mxu0 0.0
        %1802 = vmatmul.mubr.f32.gmra.mrb[0].mxu0 %v1664
        %v1803 = vpop.f32.mrb[0].mxu0
        %v1804 = vadd.f32 %v1659, %v1803
        %v1805 = vpop.f32.mrb[0].mxu0
        %v1806 = vadd.f32 %v1661, %v1805
        %1807 = vdwg.mxu0
        %s1808 = scalar_lea.vmem %s7, 16
        %v1809 = vld [vmem:[%s1808] sm:$0xff]
        %v1811 = vsel %vm1517, %v1809, 0
        %1813 = vmatprep.subr.mxu0 %v1511
        %1814 = vmatpush1.msra.mxu0 %v1510
        %1815 = vmatprep.subr.mxu0 0.0
        %1816 = vmatpush1.msra.mxu0 0.0
        %1817 = vmatprep.subr.mxu0 0.0
        %1818 = vmatpush1.msra.mxu0 0.0
        %1819 = vmatprep.subr.mxu0 0.0
        %1820 = vmatpush1.msra.mxu0 0.0
        %1821 = vmatprep.subr.mxu0 0.0
        %1822 = vmatpush1.msra.mxu0 0.0
        %1823 = vmatprep.subr.mxu0 0.0
        %1824 = vmatpush1.msra.mxu0 0.0
        %1825 = vmatprep.subr.mxu0 0.0
        %1826 = vmatpush1.msra.mxu0 0.0
        %1827 = vmatprep.subr.mxu0 0.0
        %1828 = vmatpush1.msra.mxu0 0.0
        %1829 = vmatprep.subr.mxu0 0.0
        %1830 = vmatpush1.msra.mxu0 0.0
        %1831 = vmatprep.subr.mxu0 0.0
        %1832 = vmatpush1.msra.mxu0 0.0
        %1833 = vmatprep.subr.mxu0 0.0
        %1834 = vmatpush1.msra.mxu0 0.0
        %1835 = vmatprep.subr.mxu0 0.0
        %1836 = vmatpush1.msra.mxu0 0.0
        %1837 = vmatprep.subr.mxu0 0.0
        %1838 = vmatpush1.msra.mxu0 0.0
        %1839 = vmatprep.subr.mxu0 0.0
        %1840 = vmatpush1.msra.mxu0 0.0
        %1841 = vmatprep.subr.mxu0 0.0
        %1842 = vmatpush1.msra.mxu0 0.0
        %1843 = vmatprep.subr.mxu0 0.0
        %1844 = vmatpush1.msra.mxu0 0.0
        %1845 = vmatprep.subr.mxu0 0.0
        %1846 = vmatpush1.msra.mxu0 0.0
        %1847 = vmatprep.subr.mxu0 0.0
        %1848 = vmatpush1.msra.mxu0 0.0
        %1849 = vmatprep.subr.mxu0 0.0
        %1850 = vmatpush1.msra.mxu0 0.0
        %1851 = vmatprep.subr.mxu0 0.0
        %1852 = vmatpush1.msra.mxu0 0.0
        %1853 = vmatprep.subr.mxu0 0.0
        %1854 = vmatpush1.msra.mxu0 0.0
        %1855 = vmatprep.subr.mxu0 0.0
        %1856 = vmatpush1.msra.mxu0 0.0
        %1857 = vmatprep.subr.mxu0 0.0
        %1858 = vmatpush1.msra.mxu0 0.0
        %1859 = vmatprep.subr.mxu0 0.0
        %1860 = vmatpush1.msra.mxu0 0.0
        %1861 = vmatprep.subr.mxu0 0.0
        %1862 = vmatpush1.msra.mxu0 0.0
        %1863 = vmatprep.subr.mxu0 0.0
        %1864 = vmatpush1.msra.mxu0 0.0
        %1865 = vmatprep.subr.mxu0 0.0
        %1866 = vmatpush1.msra.mxu0 0.0
        %1867 = vmatprep.subr.mxu0 0.0
        %1868 = vmatpush1.msra.mxu0 0.0
        %1869 = vmatprep.subr.mxu0 0.0
        %1870 = vmatpush1.msra.mxu0 0.0
        %1871 = vmatprep.subr.mxu0 0.0
        %1872 = vmatpush1.msra.mxu0 0.0
        %1873 = vmatprep.subr.mxu0 0.0
        %1874 = vmatpush1.msra.mxu0 0.0
        %1875 = vmatprep.subr.mxu0 0.0
        %1876 = vmatpush1.msra.mxu0 0.0
        %1877 = vmatprep.mubr.f32.mxu0 0.0
        %1878 = vmatmul.mubr.f32.gmra.mrb[0].mxu0 %v1811
        %v1879 = vpop.f32.mrb[0].mxu0
        %v1880 = vadd.f32 0.0, %v1879
        %v1881 = vpop.f32.mrb[0].mxu0
        %v1882 = vadd.f32 0.0, %v1881
        %1883 = vdwg.mxu0
        %1884 = vmatprep.subr.mxu0 %v1513
        %1885 = vmatpush1.msra.mxu0 %v1512
        %1886 = vmatprep.subr.mxu0 0.0
        %1887 = vmatpush1.msra.mxu0 0.0
        %1888 = vmatprep.subr.mxu0 0.0
        %1889 = vmatpush1.msra.mxu0 0.0
        %1890 = vmatprep.subr.mxu0 0.0
        %1891 = vmatpush1.msra.mxu0 0.0
        %1892 = vmatprep.subr.mxu0 0.0
        %1893 = vmatpush1.msra.mxu0 0.0
        %1894 = vmatprep.subr.mxu0 0.0
        %1895 = vmatpush1.msra.mxu0 0.0
        %1896 = vmatprep.subr.mxu0 0.0
        %1897 = vmatpush1.msra.mxu0 0.0
        %1898 = vmatprep.subr.mxu0 0.0
        %1899 = vmatpush1.msra.mxu0 0.0
        %1900 = vmatprep.subr.mxu0 0.0
        %1901 = vmatpush1.msra.mxu0 0.0
        %1902 = vmatprep.subr.mxu0 0.0
        %1903 = vmatpush1.msra.mxu0 0.0
        %1904 = vmatprep.subr.mxu0 0.0
        %1905 = vmatpush1.msra.mxu0 0.0
        %1906 = vmatprep.subr.mxu0 0.0
        %1907 = vmatpush1.msra.mxu0 0.0
        %1908 = vmatprep.subr.mxu0 0.0
        %1909 = vmatpush1.msra.mxu0 0.0
        %1910 = vmatprep.subr.mxu0 0.0
        %1911 = vmatpush1.msra.mxu0 0.0
        %1912 = vmatprep.subr.mxu0 0.0
        %1913 = vmatpush1.msra.mxu0 0.0
        %1914 = vmatprep.subr.mxu0 0.0
        %1915 = vmatpush1.msra.mxu0 0.0
        %1916 = vmatprep.subr.mxu0 0.0
        %1917 = vmatpush1.msra.mxu0 0.0
        %1918 = vmatprep.subr.mxu0 0.0
        %1919 = vmatpush1.msra.mxu0 0.0
        %1920 = vmatprep.subr.mxu0 0.0
        %1921 = vmatpush1.msra.mxu0 0.0
        %1922 = vmatprep.subr.mxu0 0.0
        %1923 = vmatpush1.msra.mxu0 0.0
        %1924 = vmatprep.subr.mxu0 0.0
        %1925 = vmatpush1.msra.mxu0 0.0
        %1926 = vmatprep.subr.mxu0 0.0
        %1927 = vmatpush1.msra.mxu0 0.0
        %1928 = vmatprep.subr.mxu0 0.0
        %1929 = vmatpush1.msra.mxu0 0.0
        %1930 = vmatprep.subr.mxu0 0.0
        %1931 = vmatpush1.msra.mxu0 0.0
        %1932 = vmatprep.subr.mxu0 0.0
        %1933 = vmatpush1.msra.mxu0 0.0
        %1934 = vmatprep.subr.mxu0 0.0
        %1935 = vmatpush1.msra.mxu0 0.0
        %1936 = vmatprep.subr.mxu0 0.0
        %1937 = vmatpush1.msra.mxu0 0.0
        %1938 = vmatprep.subr.mxu0 0.0
        %1939 = vmatpush1.msra.mxu0 0.0
        %1940 = vmatprep.subr.mxu0 0.0
        %1941 = vmatpush1.msra.mxu0 0.0
        %1942 = vmatprep.subr.mxu0 0.0
        %1943 = vmatpush1.msra.mxu0 0.0
        %1944 = vmatprep.subr.mxu0 0.0
        %1945 = vmatpush1.msra.mxu0 0.0
        %1946 = vmatprep.subr.mxu0 0.0
        %1947 = vmatpush1.msra.mxu0 0.0
        %1948 = vmatprep.mubr.f32.mxu0 0.0
        %1949 = vmatmul.mubr.f32.gmra.mrb[0].mxu0 %v1811
        %v1950 = vpop.f32.mrb[0].mxu0
        %v1951 = vadd.f32 0.0, %v1950
        %v1952 = vpop.f32.mrb[0].mxu0
        %v1953 = vadd.f32 0.0, %v1952
        %1954 = vdwg.mxu0
        %v1955 = vadd.f32 %v1733, %v1880
        %v1956 = vadd.f32 %v1735, %v1882
        %v1957 = vadd.f32 %v1804, %v1951
        %v1958 = vadd.f32 %v1806, %v1953
        %v1959 = vld [vmem:[%s8] sm:$0xff]
        %1961 = vset.pattern.permute.xlu0 0
        %1962 = vperm.xlu0 %1961, %v1959
        %v1963 = vpop.permute.xlu0 %1962
        %v1965 = vadd.f32 %v1955, %v1963
        %v1966 = vadd.f32 %v1956, %v1963
        %v1967 = vadd.f32 %v1957, %v1963
        %v1968 = vadd.f32 %v1958, %v1963
        %v1969 = vmax.f32 %v1965, 0.0
        %v1970 = vmax.f32 %v1966, 0.0
        %v1971 = vmax.f32 %v1967, 0.0
        %v1972 = vmax.f32 %v1968, 0.0
        %1973 = vst [vmem:[%s368] sm:$0xff] %v1969
        %1974 = vst [vmem:[%s368 + $0x8] sm:$0xff] %v1970
        %1975 = vst [vmem:[%s368 + $0x10] sm:$0xff] %v1971
        %1976 = vst [vmem:[%s368 + $0x18] sm:$0xff] %v1972
        %s1977 = sand.u32 %s232, 1
        %s1978 = scalar_lea.sflag [#allocation4], %s1977
        %s1979 = sand.u32 %s232, 1
        %s1980 = smul.addr %s1979, 32
        %s1981 = scalar_lea.vmem [#allocation7], %s1980
        // Predicated region
        $region65: #{tpu_custom_call.1} parent=55 // pred_check
          %p1982 = pneg %p242
        $region66: #{tpu_custom_call.1} parent=55 // pred_check_branch
          %1984 = sbr.rel (%p1982) target = $region68
        $region67: #{tpu_custom_call.1} parent=55 // pred_region
          %s1985 = smul.u32 4, %s25
          %s1987 = ssub.s32 512, 512
          %1988 = vsyncadd %s1978, %s1987
          %s1989 = smul.addr %s1985, 128
          %s1990 = scalar_lea.hbm %s9, %s1989
          %s1992 = sshll.u32 %s1981, 4
          %s1993 = int_to_ptr.vmem [resolvable:$true] %s1992
          %1995 = dma.vmem_to_hbm [thread:$0]  %s1993, 512, %s1990, %s1978
        $region68: #{tpu_custom_call.1} parent=55 // pred_fallthru
          _
      $region56: #{tpu_custom_call.1} parent=5 // pred_fallthru
        _
      %p1996 = scmp.le.s32.totalorder 2, %s20
      // Predicated region
      $region69: #{tpu_custom_call.1} parent=5 // pred_check
        %p1997 = pneg %p1996
      $region70: #{tpu_custom_call.1} parent=5 // pred_check_branch
        %1999 = sbr.rel (%p1997) target = $region72
      $region71: #{tpu_custom_call.1} parent=5 // pred_region
        %s2000 = ssub.s32 %s20, 2
        // Predicated region
        $region73: #{tpu_custom_call.1} parent=71 // pred_check
          %p2001 = pneg %p248
        $region74: #{tpu_custom_call.1} parent=71 // pred_check_branch
          %2003 = sbr.rel (%p2001) target = $region76
        $region75: #{tpu_custom_call.1} parent=71 // pred_region
          %s2004 = sand.u32 %s233, 1
          %s2005 = scalar_lea.sflag [#allocation4], %s2004
          %s2006 = sand.u32 %s233, 1
          %s2007 = smul.addr %s2006, 32
          %s2008 = scalar_lea.vmem [#allocation7], %s2007
          %2009 = dma.done %s2005, 512
        $region76: #{tpu_custom_call.1} parent=71 // pred_fallthru
          _
      $region72: #{tpu_custom_call.1} parent=5 // pred_fallthru
        _
    $region6: #{tpu_custom_call.1} parent=1 // loop_footer
      %s24 = sadd.s32 1, %s20
    $region7: #{tpu_custom_call.1} parent=1 // loop_footer_branch
      %19 = sbr.rel target = $region3
    $region8: #{tpu_custom_call.1} parent=1 // loop_exit
      _
    %2010 = vsyncpa [#allocation3], 1
    %s2011 = scalar_lea.sflag [#allocation3], 1
    %2012 = vsyncpa %s2011, 1
    %2013 = vsyncpa [#allocation6], 1
    %2014 = vsyncpa [#allocation4], 1
    %s2015 = scalar_lea.sflag [#allocation4], 1
    %2016 = vsyncpa %s2015, 1

</llo_original>
